<compile_context>
chip_gen: v7x
topology: tpu7x:2x2x1
jax: 0.10.0
libtpu: 0.0.40
codegen_flags: <defaults>
</compile_context>

<pallas_src>
import functools

import jax
import jax.numpy as jnp
from jax.experimental import pallas as pl
from jax.experimental.pallas import tpu as pltpu

_LANE = 128


def _round_up(x, m):
    return (x + m - 1) // m * m


def _autoencoder_kernel(num_linear, sigmoid_layers, x_ref, *refs):
    """Whole MLP for one batch tile.

    refs = (w0, b0, w1, b1, ..., out_ref).  Weights are [in, out] bf16,
    biases are [1, out] f32.  Activations stay f32 between layers and are cast
    to bf16 only at each MXU matmul (f32 accumulation).
    """
    param_refs = refs[:-1]
    out_ref = refs[-1]

    h = x_ref[...]  # bf16 (tile_m, in_dim), feeds the MXU directly
    for li in range(num_linear):
        w = param_refs[2 * li][...]        # bf16 [P_in, P_out]
        b = param_refs[2 * li + 1][...]    # f32  [1, P_out]
        z = jnp.dot(h.astype(jnp.bfloat16), w,
                    preferred_element_type=jnp.float32) + b
        if li in sigmoid_layers:           # latent_view and output_view
            # sigmoid(z) = 1/(1+exp(-z)); exp and approx reciprocal -> EUP slot.
            h = pl.reciprocal(1.0 + jnp.exp(-z), approx=True)
        else:
            h = jnp.maximum(z, 0.0)        # relu; dropout(p=0.0) == identity
    out_ref[...] = h.astype(out_ref.dtype)


def init_autoencoder_params(key, in_dim, hidden_dims, latent_dim, only_encoder=False):
    """torch.nn.Linear-style init (uniform +-1/sqrt(fan_in)).

    Weights stored as [in, out] (transposed vs torch), biases as [1, out].
    Returns flat list [w0, b0, w1, b1, ...] in forward order, all f32.
    """
    sizes = []
    in_size = in_dim
    for h in hidden_dims:
        sizes.append((in_size, h))
        in_size = h
    sizes.append((in_size, latent_dim))              # latent_view
    if not only_encoder:
        in_size = latent_dim
        for h in reversed(hidden_dims):
            sizes.append((in_size, h))
            in_size = h
        sizes.append((in_size, in_dim))              # output_view

    params = []
    for fan_in, fan_out in sizes:
        key, kw, kb = jax.random.split(key, 3)
        bound = 1.0 / jnp.sqrt(float(fan_in))
        w = jax.random.uniform(kw, (fan_in, fan_out), jnp.float32, -bound, bound)
        b = jax.random.uniform(kb, (1, fan_out), jnp.float32, -bound, bound)
        params += [w, b]
    return params


def _pad_params(params):
    """Zero-pad feature dims to multiples of 128 (lane-dense), cast weights bf16.

    The FIRST layer's input dim is left unpadded — it multiplies the raw,
    unpadded x tile.  Every output dim (and every later input dim) is padded
    with zero rows/cols, which exactly neutralizes padded-lane garbage.
    """
    padded = []
    num_linear = len(params) // 2
    for li in range(num_linear):
        w, b = params[2 * li], params[2 * li + 1]
        pin = w.shape[0] if li == 0 else _round_up(w.shape[0], _LANE)
        pout = _round_up(w.shape[1], _LANE)
        wp = jnp.zeros((pin, pout), jnp.float32).at[: w.shape[0], : w.shape[1]].set(w)
        bp = jnp.zeros((1, pout), jnp.float32).at[:, : b.shape[1]].set(b)
        padded += [wp.astype(jnp.bfloat16), bp]
    return padded


def autoencoder_forward(x, params, in_dim, hidden_dims, latent_dim,
                        only_encoder=False, tile_m=1024, min_tiles=2,
                        out_dtype=jnp.bfloat16, use_core_parallel=False,
                        return_padded=False):
    """AutoEncoder forward as a single Pallas kernel, tiled over the batch dim.

    Output is bf16 by default (halves writeback bytes); pass out_dtype=f32 if a
    downstream consumer needs full precision, and return_padded=True to skip
    the post-kernel slice entirely.
    """
    B = x.shape[0]
    num_linear = len(params) // 2
    latent_idx = len(hidden_dims)
    sigmoid_layers = frozenset({latent_idx, num_linear - 1})
    out_dim = latent_dim if only_encoder else in_dim
    out_pad = _round_up(out_dim, _LANE)

    padded_params = _pad_params(params)

    # Large tiles amortize the ~0.35us per-grid-step overhead, but keep at
    # least `min_tiles` grid steps when B allows (use min_tiles=4 on v7x so
    # each TensorCore still double-buffers).  bf16 min sublane tile is 16.
    tile_m = max(16, _round_up(min(tile_m, max(16, B // max(1, min_tiles))), 16))
    B_pad = _round_up(B, tile_m)

    # bf16 first, then batch-only pad: no padded f32 materialization, no lane pad.
    xb = x.astype(jnp.bfloat16)
    if B_pad != B:
        xb = jnp.pad(xb, ((0, B_pad - B), (0, 0)))

    # x block's last dim equals the full array dim -> (8,128) rule satisfied.
    x_spec = pl.BlockSpec((tile_m, in_dim), lambda i: (i, 0))
    out_spec = pl.BlockSpec((tile_m, out_pad), lambda i: (i, 0))
    # Constant block index -> Pallas keeps weights/biases resident across the
    # grid and skips redundant copies (total footprint < 1 MiB).
    param_specs = [pl.BlockSpec(p.shape, lambda i: (0, 0)) for p in padded_params]

    kernel = functools.partial(_autoencoder_kernel, num_linear, sigmoid_layers)

    dim_sem = (pltpu.CORE_PARALLEL,) if use_core_parallel else ("parallel",)

    out = pl.pallas_call(
        kernel,
        out_shape=jax.ShapeDtypeStruct((B_pad, out_pad), out_dtype),
        grid_spec=pltpu.PrefetchScalarGridSpec(
            num_scalar_prefetch=0,
            grid=(B_pad // tile_m,),
            in_specs=[x_spec] + param_specs,
            out_specs=out_spec,
        ),
        compiler_params=pltpu.CompilerParams(
            dimension_semantics=dim_sem,
            vmem_limit_bytes=48 * 1024 * 1024,
        ),
    )(xb, *padded_params)

    if return_padded:
        return out                     # (B_pad, out_pad), padded lanes hold 0.5
    return out[:B, :out_dim]           # bf16 slice: half the bytes of the old f32 path


def autoencoder_reference(x, params, hidden_dims):
    """Pure-JAX reference mimicking the kernel's bf16-in / f32-accumulate recipe."""
    num_linear = len(params) // 2
    latent_idx = len(hidden_dims)
    h = x.astype(jnp.bfloat16).astype(jnp.float32)
    for li in range(num_linear):
        w = params[2 * li].astype(jnp.bfloat16).astype(jnp.float32)
        b = params[2 * li + 1]
        z = h.astype(jnp.bfloat16).astype(jnp.float32) @ w + b
        if li == latent_idx or li == num_linear - 1:
            h = jax.nn.sigmoid(z)
        else:
            h = jax.nn.relu(z)   # dropout(p=0.0) == identity
    return h


if __name__ == "__main__":
    # Small, module-consistent shapes; batch large enough for a 2-tile grid.
    B = 256
    in_dim = 32
    hidden_dims = [64, 32]
    latent_dim = 16

    key = jax.random.PRNGKey(0)
    key, kx = jax.random.split(key)
    x = jax.random.normal(kx, (B, in_dim), jnp.float32)

    # Full autoencoder: encoder -> latent(sigmoid) -> decoder -> output(sigmoid).
    params = init_autoencoder_params(key, in_dim, hidden_dims, latent_dim,
                                     only_encoder=False)
    out = autoencoder_forward(x, params, in_dim, hidden_dims, latent_dim,
                              only_encoder=False)
    out = jax.block_until_ready(out)
    ref = autoencoder_reference(x, params, hidden_dims)
    assert out.shape == (B, in_dim), out.shape
    assert out.dtype == jnp.bfloat16, out.dtype
    err = float(jnp.max(jnp.abs(out.astype(jnp.float32) - ref)))
    assert err < 2e-2, f"mismatch: {err}"

    # Encoder-only branch (single sigmoid: latent layer == last layer).
    params_e = init_autoencoder_params(key, in_dim, hidden_dims, latent_dim,
                                       only_encoder=True)
    out_e = autoencoder_forward(x, params_e, in_dim, hidden_dims, latent_dim,
                                only_encoder=True)
    out_e = jax.block_until_ready(out_e)
    ref_e = autoencoder_reference(x, params_e, hidden_dims)
    assert out_e.shape == (B, latent_dim), out_e.shape
    err_e = float(jnp.max(jnp.abs(out_e.astype(jnp.float32) - ref_e)))
    assert err_e < 2e-2, f"encoder-only mismatch: {err_e}"

    print("KERNEL_OK")
</pallas_src>

<mosaic_0001>
module attributes {stable_mosaic.version = 11 : i64} {
  func.func @_autoencoder_kernel(%arg0: i32, %arg1: memref<128x32xbf16, #tpu.memory_space<vmem>>, %arg2: memref<32x128xbf16, #tpu.memory_space<vmem>>, %arg3: memref<1x128xf32, #tpu.memory_space<vmem>>, %arg4: memref<128x128xbf16, #tpu.memory_space<vmem>>, %arg5: memref<1x128xf32, #tpu.memory_space<vmem>>, %arg6: memref<128x128xbf16, #tpu.memory_space<vmem>>, %arg7: memref<1x128xf32, #tpu.memory_space<vmem>>, %arg8: memref<128x128xbf16, #tpu.memory_space<vmem>>, %arg9: memref<1x128xf32, #tpu.memory_space<vmem>>, %arg10: memref<128x128xbf16, #tpu.memory_space<vmem>>, %arg11: memref<1x128xf32, #tpu.memory_space<vmem>>, %arg12: memref<128x128xbf16, #tpu.memory_space<vmem>>, %arg13: memref<1x128xf32, #tpu.memory_space<vmem>>, %arg14: memref<128x128xbf16, #tpu.memory_space<vmem>>) attributes {dimension_semantics = [#tpu.dimension_semantics<parallel>], iteration_bounds = array<i64: 2>, scalar_prefetch = 0 : i64, scratch_operands = 0 : i64, tpu.core_type = #tpu.core_type<tc>, window_params = [{transform_indices = @transform_0, window_bounds = array<i64: 128, 32>}, {pipeline_mode = #tpu.pipeline_mode<synchronous>, transform_indices = @transform_1, window_bounds = array<i64: 32, 128>}, {pipeline_mode = #tpu.pipeline_mode<synchronous>, transform_indices = @transform_2, window_bounds = array<i64: 1, 128>}, {pipeline_mode = #tpu.pipeline_mode<synchronous>, transform_indices = @transform_3, window_bounds = array<i64: 128, 128>}, {pipeline_mode = #tpu.pipeline_mode<synchronous>, transform_indices = @transform_4, window_bounds = array<i64: 1, 128>}, {pipeline_mode = #tpu.pipeline_mode<synchronous>, transform_indices = @transform_5, window_bounds = array<i64: 128, 128>}, {pipeline_mode = #tpu.pipeline_mode<synchronous>, transform_indices = @transform_6, window_bounds = array<i64: 1, 128>}, {pipeline_mode = #tpu.pipeline_mode<synchronous>, transform_indices = @transform_7, window_bounds = array<i64: 128, 128>}, {pipeline_mode = #tpu.pipeline_mode<synchronous>, transform_indices = @transform_8, window_bounds = array<i64: 1, 128>}, {pipeline_mode = #tpu.pipeline_mode<synchronous>, transform_indices = @transform_9, window_bounds = array<i64: 128, 128>}, {pipeline_mode = #tpu.pipeline_mode<synchronous>, transform_indices = @transform_10, window_bounds = array<i64: 1, 128>}, {pipeline_mode = #tpu.pipeline_mode<synchronous>, transform_indices = @transform_11, window_bounds = array<i64: 128, 128>}, {pipeline_mode = #tpu.pipeline_mode<synchronous>, transform_indices = @transform_12, window_bounds = array<i64: 1, 128>}, {transform_indices = @transform_13, window_bounds = array<i64: 128, 128>}]} {
    %c0 = arith.constant 0 : index
    %c0_0 = arith.constant 0 : index
    %0 = vector.load %arg1[%c0, %c0_0] : memref<128x32xbf16, #tpu.memory_space<vmem>>, vector<128x32xbf16>
    %c0_1 = arith.constant 0 : index
    %c0_2 = arith.constant 0 : index
    %1 = vector.load %arg2[%c0_1, %c0_2] : memref<32x128xbf16, #tpu.memory_space<vmem>>, vector<32x128xbf16>
    %c0_3 = arith.constant 0 : index
    %c0_4 = arith.constant 0 : index
    %2 = vector.load %arg3[%c0_3, %c0_4] : memref<1x128xf32, #tpu.memory_space<vmem>>, vector<1x128xf32>
    %cst = arith.constant dense<0.000000e+00> : vector<128x128xf32>
    %3 = tpu.matmul %0, %1, %cst {dimension_numbers = #tpu.dot_dimension_numbers<[1], [0], [0], [1], [0, 0, 1, 1], [], []>} : vector<128x32xbf16>, vector<32x128xbf16>, vector<128x128xf32> -> vector<128x128xf32>
    %4 = vector.broadcast %2 : vector<1x128xf32> to vector<128x128xf32>
    %5 = arith.addf %3, %4 : vector<128x128xf32>
    %cst_5 = arith.constant 0.000000e+00 : f32
    %6 = vector.broadcast %cst_5 : f32 to vector<128x128xf32>
    %7 = arith.maximumf %5, %6 : vector<128x128xf32>
    %c0_6 = arith.constant 0 : index
    %c0_7 = arith.constant 0 : index
    %8 = vector.load %arg4[%c0_6, %c0_7] : memref<128x128xbf16, #tpu.memory_space<vmem>>, vector<128x128xbf16>
    %c0_8 = arith.constant 0 : index
    %c0_9 = arith.constant 0 : index
    %9 = vector.load %arg5[%c0_8, %c0_9] : memref<1x128xf32, #tpu.memory_space<vmem>>, vector<1x128xf32>
    %10 = arith.truncf %7 : vector<128x128xf32> to vector<128x128xbf16>
    %cst_10 = arith.constant dense<0.000000e+00> : vector<128x128xf32>
    %11 = tpu.matmul %10, %8, %cst_10 {dimension_numbers = #tpu.dot_dimension_numbers<[1], [0], [0], [1], [0, 0, 1, 1], [], []>} : vector<128x128xbf16>, vector<128x128xbf16>, vector<128x128xf32> -> vector<128x128xf32>
    %12 = vector.broadcast %9 : vector<1x128xf32> to vector<128x128xf32>
    %13 = arith.addf %11, %12 : vector<128x128xf32>
    %cst_11 = arith.constant 0.000000e+00 : f32
    %14 = vector.broadcast %cst_11 : f32 to vector<128x128xf32>
    %15 = arith.maximumf %13, %14 : vector<128x128xf32>
    %c0_12 = arith.constant 0 : index
    %c0_13 = arith.constant 0 : index
    %16 = vector.load %arg6[%c0_12, %c0_13] : memref<128x128xbf16, #tpu.memory_space<vmem>>, vector<128x128xbf16>
    %c0_14 = arith.constant 0 : index
    %c0_15 = arith.constant 0 : index
    %17 = vector.load %arg7[%c0_14, %c0_15] : memref<1x128xf32, #tpu.memory_space<vmem>>, vector<1x128xf32>
    %18 = arith.truncf %15 : vector<128x128xf32> to vector<128x128xbf16>
    %cst_16 = arith.constant dense<0.000000e+00> : vector<128x128xf32>
    %19 = tpu.matmul %18, %16, %cst_16 {dimension_numbers = #tpu.dot_dimension_numbers<[1], [0], [0], [1], [0, 0, 1, 1], [], []>} : vector<128x128xbf16>, vector<128x128xbf16>, vector<128x128xf32> -> vector<128x128xf32>
    %20 = vector.broadcast %17 : vector<1x128xf32> to vector<128x128xf32>
    %21 = arith.addf %19, %20 : vector<128x128xf32>
    %cst_17 = arith.constant 0.000000e+00 : f32
    %22 = vector.broadcast %cst_17 : f32 to vector<128x128xf32>
    %23 = arith.subf %22, %21 : vector<128x128xf32>
    %24 = math.exp %23 : vector<128x128xf32>
    %cst_18 = arith.constant 1.000000e+00 : f32
    %25 = vector.broadcast %cst_18 : f32 to vector<128x128xf32>
    %26 = arith.addf %25, %24 : vector<128x128xf32>
    %27 = tpu.reciprocal %26 {approx = true} : vector<128x128xf32> -> vector<128x128xf32>
    %c0_19 = arith.constant 0 : index
    %c0_20 = arith.constant 0 : index
    %28 = vector.load %arg8[%c0_19, %c0_20] : memref<128x128xbf16, #tpu.memory_space<vmem>>, vector<128x128xbf16>
    %c0_21 = arith.constant 0 : index
    %c0_22 = arith.constant 0 : index
    %29 = vector.load %arg9[%c0_21, %c0_22] : memref<1x128xf32, #tpu.memory_space<vmem>>, vector<1x128xf32>
    %30 = arith.truncf %27 : vector<128x128xf32> to vector<128x128xbf16>
    %cst_23 = arith.constant dense<0.000000e+00> : vector<128x128xf32>
    %31 = tpu.matmul %30, %28, %cst_23 {dimension_numbers = #tpu.dot_dimension_numbers<[1], [0], [0], [1], [0, 0, 1, 1], [], []>} : vector<128x128xbf16>, vector<128x128xbf16>, vector<128x128xf32> -> vector<128x128xf32>
    %32 = vector.broadcast %29 : vector<1x128xf32> to vector<128x128xf32>
    %33 = arith.addf %31, %32 : vector<128x128xf32>
    %cst_24 = arith.constant 0.000000e+00 : f32
    %34 = vector.broadcast %cst_24 : f32 to vector<128x128xf32>
    %35 = arith.maximumf %33, %34 : vector<128x128xf32>
    %c0_25 = arith.constant 0 : index
    %c0_26 = arith.constant 0 : index
    %36 = vector.load %arg10[%c0_25, %c0_26] : memref<128x128xbf16, #tpu.memory_space<vmem>>, vector<128x128xbf16>
    %c0_27 = arith.constant 0 : index
    %c0_28 = arith.constant 0 : index
    %37 = vector.load %arg11[%c0_27, %c0_28] : memref<1x128xf32, #tpu.memory_space<vmem>>, vector<1x128xf32>
    %38 = arith.truncf %35 : vector<128x128xf32> to vector<128x128xbf16>
    %cst_29 = arith.constant dense<0.000000e+00> : vector<128x128xf32>
    %39 = tpu.matmul %38, %36, %cst_29 {dimension_numbers = #tpu.dot_dimension_numbers<[1], [0], [0], [1], [0, 0, 1, 1], [], []>} : vector<128x128xbf16>, vector<128x128xbf16>, vector<128x128xf32> -> vector<128x128xf32>
    %40 = vector.broadcast %37 : vector<1x128xf32> to vector<128x128xf32>
    %41 = arith.addf %39, %40 : vector<128x128xf32>
    %cst_30 = arith.constant 0.000000e+00 : f32
    %42 = vector.broadcast %cst_30 : f32 to vector<128x128xf32>
    %43 = arith.maximumf %41, %42 : vector<128x128xf32>
    %c0_31 = arith.constant 0 : index
    %c0_32 = arith.constant 0 : index
    %44 = vector.load %arg12[%c0_31, %c0_32] : memref<128x128xbf16, #tpu.memory_space<vmem>>, vector<128x128xbf16>
    %c0_33 = arith.constant 0 : index
    %c0_34 = arith.constant 0 : index
    %45 = vector.load %arg13[%c0_33, %c0_34] : memref<1x128xf32, #tpu.memory_space<vmem>>, vector<1x128xf32>
    %46 = arith.truncf %43 : vector<128x128xf32> to vector<128x128xbf16>
    %cst_35 = arith.constant dense<0.000000e+00> : vector<128x128xf32>
    %47 = tpu.matmul %46, %44, %cst_35 {dimension_numbers = #tpu.dot_dimension_numbers<[1], [0], [0], [1], [0, 0, 1, 1], [], []>} : vector<128x128xbf16>, vector<128x128xbf16>, vector<128x128xf32> -> vector<128x128xf32>
    %48 = vector.broadcast %45 : vector<1x128xf32> to vector<128x128xf32>
    %49 = arith.addf %47, %48 : vector<128x128xf32>
    %cst_36 = arith.constant 0.000000e+00 : f32
    %50 = vector.broadcast %cst_36 : f32 to vector<128x128xf32>
    %51 = arith.subf %50, %49 : vector<128x128xf32>
    %52 = math.exp %51 : vector<128x128xf32>
    %cst_37 = arith.constant 1.000000e+00 : f32
    %53 = vector.broadcast %cst_37 : f32 to vector<128x128xf32>
    %54 = arith.addf %53, %52 : vector<128x128xf32>
    %55 = tpu.reciprocal %54 {approx = true} : vector<128x128xf32> -> vector<128x128xf32>
    %56 = arith.truncf %55 : vector<128x128xf32> to vector<128x128xbf16>
    %c0_38 = arith.constant 0 : index
    %c0_39 = arith.constant 0 : index
    %57 = vector.load %arg14[%c0_38, %c0_39] : memref<128x128xbf16, #tpu.memory_space<vmem>>, vector<128x128xbf16>
    tpu.vector_store %arg14[%c0_38, %c0_39], %56 {strides = array<i32>} : memref<128x128xbf16, #tpu.memory_space<vmem>>, vector<128x128xbf16>,
    return
  }
  func.func @transform_0(%arg0: i32) -> (i32, i32) {
    %c0_i32 = arith.constant 0 : i32
    %c0_i32_0 = arith.constant 0 : i32
    return %arg0, %c0_i32 : i32, i32
  }
  func.func @transform_1(%arg0: i32) -> (i32, i32) {
    %c0_i32 = arith.constant 0 : i32
    %c0_i32_0 = arith.constant 0 : i32
    %c0_i32_1 = arith.constant 0 : i32
    return %c0_i32, %c0_i32_0 : i32, i32
  }
  func.func @transform_2(%arg0: i32) -> (i32, i32) {
    %c0_i32 = arith.constant 0 : i32
    %c0_i32_0 = arith.constant 0 : i32
    %c0_i32_1 = arith.constant 0 : i32
    return %c0_i32, %c0_i32_0 : i32, i32
  }
  func.func @transform_3(%arg0: i32) -> (i32, i32) {
    %c0_i32 = arith.constant 0 : i32
    %c0_i32_0 = arith.constant 0 : i32
    %c0_i32_1 = arith.constant 0 : i32
    return %c0_i32, %c0_i32_0 : i32, i32
  }
  func.func @transform_4(%arg0: i32) -> (i32, i32) {
    %c0_i32 = arith.constant 0 : i32
    %c0_i32_0 = arith.constant 0 : i32
    %c0_i32_1 = arith.constant 0 : i32
    return %c0_i32, %c0_i32_0 : i32, i32
  }
  func.func @transform_5(%arg0: i32) -> (i32, i32) {
    %c0_i32 = arith.constant 0 : i32
    %c0_i32_0 = arith.constant 0 : i32
    %c0_i32_1 = arith.constant 0 : i32
    return %c0_i32, %c0_i32_0 : i32, i32
  }
  func.func @transform_6(%arg0: i32) -> (i32, i32) {
    %c0_i32 = arith.constant 0 : i32
    %c0_i32_0 = arith.constant 0 : i32
    %c0_i32_1 = arith.constant 0 : i32
    return %c0_i32, %c0_i32_0 : i32, i32
  }
  func.func @transform_7(%arg0: i32) -> (i32, i32) {
    %c0_i32 = arith.constant 0 : i32
    %c0_i32_0 = arith.constant 0 : i32
    %c0_i32_1 = arith.constant 0 : i32
    return %c0_i32, %c0_i32_0 : i32, i32
  }
  func.func @transform_8(%arg0: i32) -> (i32, i32) {
    %c0_i32 = arith.constant 0 : i32
    %c0_i32_0 = arith.constant 0 : i32
    %c0_i32_1 = arith.constant 0 : i32
    return %c0_i32, %c0_i32_0 : i32, i32
  }
  func.func @transform_9(%arg0: i32) -> (i32, i32) {
    %c0_i32 = arith.constant 0 : i32
    %c0_i32_0 = arith.constant 0 : i32
    %c0_i32_1 = arith.constant 0 : i32
    return %c0_i32, %c0_i32_0 : i32, i32
  }
  func.func @transform_10(%arg0: i32) -> (i32, i32) {
    %c0_i32 = arith.constant 0 : i32
    %c0_i32_0 = arith.constant 0 : i32
    %c0_i32_1 = arith.constant 0 : i32
    return %c0_i32, %c0_i32_0 : i32, i32
  }
  func.func @transform_11(%arg0: i32) -> (i32, i32) {
    %c0_i32 = arith.constant 0 : i32
    %c0_i32_0 = arith.constant 0 : i32
    %c0_i32_1 = arith.constant 0 : i32
    return %c0_i32, %c0_i32_0 : i32, i32
  }
  func.func @transform_12(%arg0: i32) -> (i32, i32) {
    %c0_i32 = arith.constant 0 : i32
    %c0_i32_0 = arith.constant 0 : i32
    %c0_i32_1 = arith.constant 0 : i32
    return %c0_i32, %c0_i32_0 : i32, i32
  }
  func.func @transform_13(%arg0: i32) -> (i32, i32) {
    %c0_i32 = arith.constant 0 : i32
    %c0_i32_0 = arith.constant 0 : i32
    return %arg0, %c0_i32 : i32, i32
  }
}

</mosaic_0001>

<llo_original>
// kernel: tpu_custom_call.1
$region0: #{tpu_custom_call.1}
  #allocation0 [shape = 'u32[]', space=smem, size = 0x4, offset = 0x4, fixed_abs, tag = 'smem constant byte address 0x4 - core index']
  #allocation1 [shape = 'u32[144,128]{1,0:T(1,128)}', space=vmem, size = 0x12000, scoped, tag = 'internal scratch']
  %s0 = inlined_call_operand.vmem [shape: bf16[256,32], index: 0, kind: input, shape index: {}]
  %s1 = inlined_call_operand.hbm [shape: bf16[32,128], index: 1, kind: input, shape index: {}]
  %s2 = inlined_call_operand.vmem [shape: f32[1,128], index: 2, kind: input, shape index: {}]
  %s3 = inlined_call_operand.vmem [shape: bf16[128,128], index: 3, kind: input, shape index: {}]
  %s4 = inlined_call_operand.vmem [shape: f32[1,128], index: 4, kind: input, shape index: {}]
  %s5 = inlined_call_operand.vmem [shape: bf16[128,128], index: 5, kind: input, shape index: {}]
  %s6 = inlined_call_operand.hbm [shape: f32[1,128], index: 6, kind: input, shape index: {}]
  %s7 = inlined_call_operand.hbm [shape: bf16[128,128], index: 7, kind: input, shape index: {}]
  %s8 = inlined_call_operand.hbm [shape: f32[1,128], index: 8, kind: input, shape index: {}]
  %s9 = inlined_call_operand.vmem [shape: bf16[128,128], index: 9, kind: input, shape index: {}]
  %s10 = inlined_call_operand.vmem [shape: f32[1,128], index: 10, kind: input, shape index: {}]
  %s11 = inlined_call_operand.hbm [shape: bf16[128,128], index: 11, kind: input, shape index: {}]
  %s12 = inlined_call_operand.vmem [shape: f32[1,128], index: 12, kind: input, shape index: {}]
  %s13 = inlined_call_operand.hbm [shape: bf16[256,128], index: 13, kind: output, shape index: {}]
  %s14 = sld [smem:[#allocation0]]
  $region105: #{tpu_custom_call.1} parent=0
    _
  %s16 = ssub.s32 1, %s14
  %s17 = scalar_select 0, %s16, %s14
  $region1: #{tpu_custom_call.1} parent=0
    #allocation2 [shape = 'u8[8192]{0}', space=vmem, size = 0x2000, scoped, tag = 'input window, operand 1, single buffered']
    #allocation3 [shape = 's32[2]{0}', space=sflag, size = 0x8, scoped, tag = 'scoped memory for tpu_custom_call.1']
    #allocation4 [shape = 's32[2]{0}', space=sflag, size = 0x8, scoped, tag = 'scoped memory for tpu_custom_call.1']
    #allocation5 [shape = 'u8[512]{0}', space=vmem, size = 0x400, scoped, tag = 'input window, operand 6, single buffered']
    #allocation6 [shape = 's32[1]{0}', space=sflag, size = 0x4, scoped, tag = 'scoped memory for tpu_custom_call.1']
    #allocation7 [shape = 'u8[32768]{0}', space=vmem, size = 0x8000, scoped, tag = 'input window, operand 7, single buffered']
    #allocation8 [shape = 'u8[512]{0}', space=vmem, size = 0x400, scoped, tag = 'input window, operand 8, single buffered']
    #allocation9 [shape = 's32[1]{0}', space=sflag, size = 0x4, scoped, tag = 'scoped memory for tpu_custom_call.1']
    #allocation10 [shape = 'u8[32768]{0}', space=vmem, size = 0x8000, scoped, tag = 'input window, operand 11, single buffered']
    #allocation11 [shape = 'u8[65536]{0}', space=vmem, size = 0x10000, scoped, tag = 'output window, operand 0']
    %18 = vsyncpa [#allocation3], 0
    %19 = vsyncpa [#allocation6], 0
    %20 = vsyncpa [#allocation9], 0
    %21 = vsyncpa [#allocation4], 0
    %s22 = scalar_lea.sflag [#allocation4], 1
    %23 = vsyncpa %s22, 0
    loop: start=0, step=1, limit=4
    $region2: #{tpu_custom_call.1} parent=1 // loop_pre_header
      _
    $region3: #{tpu_custom_call.1} parent=1 // loop_header
      %s25 = sphi 0, %s29
      %p26 = scmp.ge.s32.totalorder %s25, 4
      %s35 = sphi 0, %s37
      %s38 = sphi 0, %s35
      %s39 = sphi 0, %s38
      %s55 = sphi 0, %s39
      %s59 = sphi 0, %s59
      %s61 = sphi 0, %s59
      %s62 = sphi 0, %s61
      %s76 = sphi 0, %s62
      %s80 = sphi 0, %s80
      %s82 = sphi 0, %s80
      %s83 = sphi 0, %s82
      %s97 = sphi 0, %s83
      %s101 = sphi 0, %s101
      %s103 = sphi 0, %s101
      %s104 = sphi 0, %s103
      %s118 = sphi 0, %s104
      %s122 = sphi 0, %s122
      %s124 = sphi 0, %s122
      %s125 = sphi 0, %s124
      %s139 = sphi 0, %s125
      %s143 = sphi 0, %s143
      %s145 = sphi 0, %s143
      %s146 = sphi 0, %s145
      %s160 = sphi 0, %s146
      %s164 = sphi 0, %s164
      %s166 = sphi 0, %s164
      %s167 = sphi 0, %s166
      %s181 = sphi 0, %s167
      %s185 = sphi 0, %s185
      %s187 = sphi 0, %s185
      %s188 = sphi 0, %s187
      %s202 = sphi 0, %s188
      %s206 = sphi 0, %s206
      %s208 = sphi 0, %s206
      %s209 = sphi 0, %s208
      %s223 = sphi 0, %s209
      %s227 = sphi 0, %s227
      %s229 = sphi 0, %s227
      %s230 = sphi 0, %s229
      %s244 = sphi 0, %s230
      %s248 = sphi 0, %s248
      %s250 = sphi 0, %s248
      %s251 = sphi 0, %s250
      %s265 = sphi 0, %s251
      %s269 = sphi 0, %s269
      %s271 = sphi 0, %s269
      %s272 = sphi 0, %s271
      %s286 = sphi 0, %s272
      %s290 = sphi 0, %s290
      %s292 = sphi 0, %s290
      %s293 = sphi 0, %s292
      %s307 = sphi 0, %s293
      %s313 = sphi 0, %s315
      %s316 = sphi 0, %s313
      %s317 = sphi 0, %s316
      %s333 = sphi 0, %s317
    $region4: #{tpu_custom_call.1} parent=1 // loop_header_branch
      %28 = sbr.rel (%p26) target = $region8
    $region5: #{tpu_custom_call.1} parent=1 // loop_body
      %s30 = ssub.s32 %s25, 1
      %s31 = ssub.s32 %s25, 2
      %s32 = sadd.s32 %s25, 1
      %s33 = ssub.s32 %s25, %s32
      %p34 = scmp.eq.s32.totalorder %s33, 0
      %s36 = sadd.s32 %s35, 1
      %s37 = scalar_select %p34, %s35, %s36
      %p40 = pneg %p34
      %p41 = scmp.eq.s32.totalorder %s25, 1
      %p42 = por %p40, %p41
      %p43 = scmp.ne.s32.totalorder %s35, %s38
      %p44 = scmp.eq.s32.totalorder %s25, 0
      %p45 = por %p43, %p44
      %p46 = scmp.ne.s32.totalorder %s35, %s38
      %p47 = scmp.eq.s32.totalorder %s30, 1
      %p48 = por %p46, %p47
      %p49 = scmp.ne.s32.totalorder %s38, %s39
      %p50 = scmp.eq.s32.totalorder %s30, 0
      %p51 = por %p49, %p50
      %p52 = scmp.ne.s32.totalorder %s38, %s39
      %p53 = scmp.eq.s32.totalorder %s31, 1
      %p54 = por %p52, %p53
      %p56 = scmp.ne.s32.totalorder %s39, %s55
      %p57 = scmp.eq.s32.totalorder %s31, 0
      %p58 = por %p56, %p57
      %s60 = sadd.s32 %s59, 1
      %p63 = scmp.eq.s32.totalorder %s25, 1
      %p64 = scmp.ne.s32.totalorder %s59, %s61
      %p65 = scmp.eq.s32.totalorder %s25, 0
      %p66 = por %p64, %p65
      %p67 = scmp.ne.s32.totalorder %s59, %s61
      %p68 = scmp.eq.s32.totalorder %s30, 1
      %p69 = por %p67, %p68
      %p70 = scmp.ne.s32.totalorder %s61, %s62
      %p71 = scmp.eq.s32.totalorder %s30, 0
      %p72 = por %p70, %p71
      %p73 = scmp.ne.s32.totalorder %s61, %s62
      %p74 = scmp.eq.s32.totalorder %s31, 1
      %p75 = por %p73, %p74
      %p77 = scmp.ne.s32.totalorder %s62, %s76
      %p78 = scmp.eq.s32.totalorder %s31, 0
      %p79 = por %p77, %p78
      %s81 = sadd.s32 %s80, 1
      %p84 = scmp.eq.s32.totalorder %s25, 1
      %p85 = scmp.ne.s32.totalorder %s80, %s82
      %p86 = scmp.eq.s32.totalorder %s25, 0
      %p87 = por %p85, %p86
      %p88 = scmp.ne.s32.totalorder %s80, %s82
      %p89 = scmp.eq.s32.totalorder %s30, 1
      %p90 = por %p88, %p89
      %p91 = scmp.ne.s32.totalorder %s82, %s83
      %p92 = scmp.eq.s32.totalorder %s30, 0
      %p93 = por %p91, %p92
      %p94 = scmp.ne.s32.totalorder %s82, %s83
      %p95 = scmp.eq.s32.totalorder %s31, 1
      %p96 = por %p94, %p95
      %p98 = scmp.ne.s32.totalorder %s83, %s97
      %p99 = scmp.eq.s32.totalorder %s31, 0
      %p100 = por %p98, %p99
      %s102 = sadd.s32 %s101, 1
      %p105 = scmp.eq.s32.totalorder %s25, 1
      %p106 = scmp.ne.s32.totalorder %s101, %s103
      %p107 = scmp.eq.s32.totalorder %s25, 0
      %p108 = por %p106, %p107
      %p109 = scmp.ne.s32.totalorder %s101, %s103
      %p110 = scmp.eq.s32.totalorder %s30, 1
      %p111 = por %p109, %p110
      %p112 = scmp.ne.s32.totalorder %s103, %s104
      %p113 = scmp.eq.s32.totalorder %s30, 0
      %p114 = por %p112, %p113
      %p115 = scmp.ne.s32.totalorder %s103, %s104
      %p116 = scmp.eq.s32.totalorder %s31, 1
      %p117 = por %p115, %p116
      %p119 = scmp.ne.s32.totalorder %s104, %s118
      %p120 = scmp.eq.s32.totalorder %s31, 0
      %p121 = por %p119, %p120
      %s123 = sadd.s32 %s122, 1
      %p126 = scmp.eq.s32.totalorder %s25, 1
      %p127 = scmp.ne.s32.totalorder %s122, %s124
      %p128 = scmp.eq.s32.totalorder %s25, 0
      %p129 = por %p127, %p128
      %p130 = scmp.ne.s32.totalorder %s122, %s124
      %p131 = scmp.eq.s32.totalorder %s30, 1
      %p132 = por %p130, %p131
      %p133 = scmp.ne.s32.totalorder %s124, %s125
      %p134 = scmp.eq.s32.totalorder %s30, 0
      %p135 = por %p133, %p134
      %p136 = scmp.ne.s32.totalorder %s124, %s125
      %p137 = scmp.eq.s32.totalorder %s31, 1
      %p138 = por %p136, %p137
      %p140 = scmp.ne.s32.totalorder %s125, %s139
      %p141 = scmp.eq.s32.totalorder %s31, 0
      %p142 = por %p140, %p141
      %s144 = sadd.s32 %s143, 1
      %p147 = scmp.eq.s32.totalorder %s25, 1
      %p148 = scmp.ne.s32.totalorder %s143, %s145
      %p149 = scmp.eq.s32.totalorder %s25, 0
      %p150 = por %p148, %p149
      %p151 = scmp.ne.s32.totalorder %s143, %s145
      %p152 = scmp.eq.s32.totalorder %s30, 1
      %p153 = por %p151, %p152
      %p154 = scmp.ne.s32.totalorder %s145, %s146
      %p155 = scmp.eq.s32.totalorder %s30, 0
      %p156 = por %p154, %p155
      %p157 = scmp.ne.s32.totalorder %s145, %s146
      %p158 = scmp.eq.s32.totalorder %s31, 1
      %p159 = por %p157, %p158
      %p161 = scmp.ne.s32.totalorder %s146, %s160
      %p162 = scmp.eq.s32.totalorder %s31, 0
      %p163 = por %p161, %p162
      %s165 = sadd.s32 %s164, 1
      %p168 = scmp.eq.s32.totalorder %s25, 1
      %p169 = scmp.ne.s32.totalorder %s164, %s166
      %p170 = scmp.eq.s32.totalorder %s25, 0
      %p171 = por %p169, %p170
      %p172 = scmp.ne.s32.totalorder %s164, %s166
      %p173 = scmp.eq.s32.totalorder %s30, 1
      %p174 = por %p172, %p173
      %p175 = scmp.ne.s32.totalorder %s166, %s167
      %p176 = scmp.eq.s32.totalorder %s30, 0
      %p177 = por %p175, %p176
      %p178 = scmp.ne.s32.totalorder %s166, %s167
      %p179 = scmp.eq.s32.totalorder %s31, 1
      %p180 = por %p178, %p179
      %p182 = scmp.ne.s32.totalorder %s167, %s181
      %p183 = scmp.eq.s32.totalorder %s31, 0
      %p184 = por %p182, %p183
      %s186 = sadd.s32 %s185, 1
      %p189 = scmp.eq.s32.totalorder %s25, 1
      %p190 = scmp.ne.s32.totalorder %s185, %s187
      %p191 = scmp.eq.s32.totalorder %s25, 0
      %p192 = por %p190, %p191
      %p193 = scmp.ne.s32.totalorder %s185, %s187
      %p194 = scmp.eq.s32.totalorder %s30, 1
      %p195 = por %p193, %p194
      %p196 = scmp.ne.s32.totalorder %s187, %s188
      %p197 = scmp.eq.s32.totalorder %s30, 0
      %p198 = por %p196, %p197
      %p199 = scmp.ne.s32.totalorder %s187, %s188
      %p200 = scmp.eq.s32.totalorder %s31, 1
      %p201 = por %p199, %p200
      %p203 = scmp.ne.s32.totalorder %s188, %s202
      %p204 = scmp.eq.s32.totalorder %s31, 0
      %p205 = por %p203, %p204
      %s207 = sadd.s32 %s206, 1
      %p210 = scmp.eq.s32.totalorder %s25, 1
      %p211 = scmp.ne.s32.totalorder %s206, %s208
      %p212 = scmp.eq.s32.totalorder %s25, 0
      %p213 = por %p211, %p212
      %p214 = scmp.ne.s32.totalorder %s206, %s208
      %p215 = scmp.eq.s32.totalorder %s30, 1
      %p216 = por %p214, %p215
      %p217 = scmp.ne.s32.totalorder %s208, %s209
      %p218 = scmp.eq.s32.totalorder %s30, 0
      %p219 = por %p217, %p218
      %p220 = scmp.ne.s32.totalorder %s208, %s209
      %p221 = scmp.eq.s32.totalorder %s31, 1
      %p222 = por %p220, %p221
      %p224 = scmp.ne.s32.totalorder %s209, %s223
      %p225 = scmp.eq.s32.totalorder %s31, 0
      %p226 = por %p224, %p225
      %s228 = sadd.s32 %s227, 1
      %p231 = scmp.eq.s32.totalorder %s25, 1
      %p232 = scmp.ne.s32.totalorder %s227, %s229
      %p233 = scmp.eq.s32.totalorder %s25, 0
      %p234 = por %p232, %p233
      %p235 = scmp.ne.s32.totalorder %s227, %s229
      %p236 = scmp.eq.s32.totalorder %s30, 1
      %p237 = por %p235, %p236
      %p238 = scmp.ne.s32.totalorder %s229, %s230
      %p239 = scmp.eq.s32.totalorder %s30, 0
      %p240 = por %p238, %p239
      %p241 = scmp.ne.s32.totalorder %s229, %s230
      %p242 = scmp.eq.s32.totalorder %s31, 1
      %p243 = por %p241, %p242
      %p245 = scmp.ne.s32.totalorder %s230, %s244
      %p246 = scmp.eq.s32.totalorder %s31, 0
      %p247 = por %p245, %p246
      %s249 = sadd.s32 %s248, 1
      %p252 = scmp.eq.s32.totalorder %s25, 1
      %p253 = scmp.ne.s32.totalorder %s248, %s250
      %p254 = scmp.eq.s32.totalorder %s25, 0
      %p255 = por %p253, %p254
      %p256 = scmp.ne.s32.totalorder %s248, %s250
      %p257 = scmp.eq.s32.totalorder %s30, 1
      %p258 = por %p256, %p257
      %p259 = scmp.ne.s32.totalorder %s250, %s251
      %p260 = scmp.eq.s32.totalorder %s30, 0
      %p261 = por %p259, %p260
      %p262 = scmp.ne.s32.totalorder %s250, %s251
      %p263 = scmp.eq.s32.totalorder %s31, 1
      %p264 = por %p262, %p263
      %p266 = scmp.ne.s32.totalorder %s251, %s265
      %p267 = scmp.eq.s32.totalorder %s31, 0
      %p268 = por %p266, %p267
      %s270 = sadd.s32 %s269, 1
      %p273 = scmp.eq.s32.totalorder %s25, 1
      %p274 = scmp.ne.s32.totalorder %s269, %s271
      %p275 = scmp.eq.s32.totalorder %s25, 0
      %p276 = por %p274, %p275
      %p277 = scmp.ne.s32.totalorder %s269, %s271
      %p278 = scmp.eq.s32.totalorder %s30, 1
      %p279 = por %p277, %p278
      %p280 = scmp.ne.s32.totalorder %s271, %s272
      %p281 = scmp.eq.s32.totalorder %s30, 0
      %p282 = por %p280, %p281
      %p283 = scmp.ne.s32.totalorder %s271, %s272
      %p284 = scmp.eq.s32.totalorder %s31, 1
      %p285 = por %p283, %p284
      %p287 = scmp.ne.s32.totalorder %s272, %s286
      %p288 = scmp.eq.s32.totalorder %s31, 0
      %p289 = por %p287, %p288
      %s291 = sadd.s32 %s290, 1
      %p294 = scmp.eq.s32.totalorder %s25, 1
      %p295 = scmp.ne.s32.totalorder %s290, %s292
      %p296 = scmp.eq.s32.totalorder %s25, 0
      %p297 = por %p295, %p296
      %p298 = scmp.ne.s32.totalorder %s290, %s292
      %p299 = scmp.eq.s32.totalorder %s30, 1
      %p300 = por %p298, %p299
      %p301 = scmp.ne.s32.totalorder %s292, %s293
      %p302 = scmp.eq.s32.totalorder %s30, 0
      %p303 = por %p301, %p302
      %p304 = scmp.ne.s32.totalorder %s292, %s293
      %p305 = scmp.eq.s32.totalorder %s31, 1
      %p306 = por %p304, %p305
      %p308 = scmp.ne.s32.totalorder %s293, %s307
      %p309 = scmp.eq.s32.totalorder %s31, 0
      %p310 = por %p308, %p309
      %s311 = ssub.s32 %s25, %s32
      %p312 = scmp.eq.s32.totalorder %s311, 0
      %s314 = sadd.s32 %s313, 1
      %s315 = scalar_select %p312, %s313, %s314
      %p318 = pneg %p312
      %p319 = scmp.eq.s32.totalorder %s25, 1
      %p320 = por %p318, %p319
      %p321 = scmp.ne.s32.totalorder %s313, %s316
      %p322 = scmp.eq.s32.totalorder %s25, 0
      %p323 = por %p321, %p322
      %p324 = scmp.ne.s32.totalorder %s313, %s316
      %p325 = scmp.eq.s32.totalorder %s30, 1
      %p326 = por %p324, %p325
      %p327 = scmp.ne.s32.totalorder %s316, %s317
      %p328 = scmp.eq.s32.totalorder %s30, 0
      %p329 = por %p327, %p328
      %p330 = scmp.ne.s32.totalorder %s316, %s317
      %p331 = scmp.eq.s32.totalorder %s31, 1
      %p332 = por %p330, %p331
      %p334 = scmp.ne.s32.totalorder %s317, %s333
      %p335 = scmp.eq.s32.totalorder %s31, 0
      %p336 = por %p334, %p335
      %p337 = scmp.le.s32.totalorder 1, %s25
      %p338 = scmp.lt.s32.totalorder %s25, 3
      %p339 = pnand %p337, %p338
      %p340 = pneg %p339
      // Predicated region
      $region9: #{tpu_custom_call.1} parent=5 // pred_check
        _
      $region10: #{tpu_custom_call.1} parent=5 // pred_check_branch
        %342 = sbr.rel (%p339) target = $region12
      $region11: #{tpu_custom_call.1} parent=5 // pred_region
        %s343 = ssub.s32 %s25, 1
        // Predicated region
        $region13: #{tpu_custom_call.1} parent=11 // pred_check
          %p344 = pneg %p72
        $region14: #{tpu_custom_call.1} parent=11 // pred_check_branch
          %346 = sbr.rel (%p344) target = $region16
        $region15: #{tpu_custom_call.1} parent=11 // pred_region
          %s348 = ssub.s32 256, 256
          %349 = vsyncadd [#allocation3], %s348
          %s350 = sshll.u32 [#allocation2], 4
          %s351 = int_to_ptr.vmem [resolvable:$true] %s350
          %356 = dma.hbm_to_vmem [thread:$0]  %s1, 256, %s351, [#allocation3], 64, 64, 4
        $region16: #{tpu_custom_call.1} parent=11 // pred_fallthru
          _
        // Predicated region
        $region17: #{tpu_custom_call.1} parent=11 // pred_check
          %p357 = pneg %p93
        $region18: #{tpu_custom_call.1} parent=11 // pred_check_branch
          %359 = sbr.rel (%p357) target = $region20
        $region19: #{tpu_custom_call.1} parent=11 // pred_region
          _
        $region20: #{tpu_custom_call.1} parent=11 // pred_fallthru
          _
        // Predicated region
        $region21: #{tpu_custom_call.1} parent=11 // pred_check
          %p360 = pneg %p114
        $region22: #{tpu_custom_call.1} parent=11 // pred_check_branch
          %362 = sbr.rel (%p360) target = $region24
        $region23: #{tpu_custom_call.1} parent=11 // pred_region
          _
        $region24: #{tpu_custom_call.1} parent=11 // pred_fallthru
          _
        // Predicated region
        $region25: #{tpu_custom_call.1} parent=11 // pred_check
          %p363 = pneg %p135
        $region26: #{tpu_custom_call.1} parent=11 // pred_check_branch
          %365 = sbr.rel (%p363) target = $region28
        $region27: #{tpu_custom_call.1} parent=11 // pred_region
          _
        $region28: #{tpu_custom_call.1} parent=11 // pred_fallthru
          _
        // Predicated region
        $region29: #{tpu_custom_call.1} parent=11 // pred_check
          %p366 = pneg %p156
        $region30: #{tpu_custom_call.1} parent=11 // pred_check_branch
          %368 = sbr.rel (%p366) target = $region32
        $region31: #{tpu_custom_call.1} parent=11 // pred_region
          _
        $region32: #{tpu_custom_call.1} parent=11 // pred_fallthru
          _
        // Predicated region
        $region33: #{tpu_custom_call.1} parent=11 // pred_check
          %p369 = pneg %p177
        $region34: #{tpu_custom_call.1} parent=11 // pred_check_branch
          %371 = sbr.rel (%p369) target = $region36
        $region35: #{tpu_custom_call.1} parent=11 // pred_region
          %s373 = ssub.s32 16, 16
          %374 = vsyncadd [#allocation6], %s373
          %s376 = sshll.u32 [#allocation5], 4
          %s377 = int_to_ptr.vmem [resolvable:$true] %s376
          %379 = dma.hbm_to_vmem [thread:$0]  %s6, 16, %s377, [#allocation6]
        $region36: #{tpu_custom_call.1} parent=11 // pred_fallthru
          _
        // Predicated region
        $region37: #{tpu_custom_call.1} parent=11 // pred_check
          %p380 = pneg %p198
        $region38: #{tpu_custom_call.1} parent=11 // pred_check_branch
          %382 = sbr.rel (%p380) target = $region40
        $region39: #{tpu_custom_call.1} parent=11 // pred_region
          %s384 = ssub.s32 1024, 1024
          %385 = vsyncadd [#allocation6], %s384
          %s386 = sshll.u32 [#allocation7], 4
          %s387 = int_to_ptr.vmem [resolvable:$true] %s386
          %392 = dma.hbm_to_vmem [thread:$0]  %s7, 1024, %s387, [#allocation6], 64, 64, 4
        $region40: #{tpu_custom_call.1} parent=11 // pred_fallthru
          _
        // Predicated region
        $region41: #{tpu_custom_call.1} parent=11 // pred_check
          %p393 = pneg %p219
        $region42: #{tpu_custom_call.1} parent=11 // pred_check_branch
          %395 = sbr.rel (%p393) target = $region44
        $region43: #{tpu_custom_call.1} parent=11 // pred_region
          %s397 = ssub.s32 16, 16
          %398 = vsyncadd [#allocation9], %s397
          %s400 = sshll.u32 [#allocation8], 4
          %s401 = int_to_ptr.vmem [resolvable:$true] %s400
          %403 = dma.hbm_to_vmem [thread:$0]  %s8, 16, %s401, [#allocation9]
        $region44: #{tpu_custom_call.1} parent=11 // pred_fallthru
          _
        // Predicated region
        $region45: #{tpu_custom_call.1} parent=11 // pred_check
          %p404 = pneg %p240
        $region46: #{tpu_custom_call.1} parent=11 // pred_check_branch
          %406 = sbr.rel (%p404) target = $region48
        $region47: #{tpu_custom_call.1} parent=11 // pred_region
          _
        $region48: #{tpu_custom_call.1} parent=11 // pred_fallthru
          _
        // Predicated region
        $region49: #{tpu_custom_call.1} parent=11 // pred_check
          %p407 = pneg %p261
        $region50: #{tpu_custom_call.1} parent=11 // pred_check_branch
          %409 = sbr.rel (%p407) target = $region52
        $region51: #{tpu_custom_call.1} parent=11 // pred_region
          _
        $region52: #{tpu_custom_call.1} parent=11 // pred_fallthru
          _
        // Predicated region
        $region53: #{tpu_custom_call.1} parent=11 // pred_check
          %p410 = pneg %p282
        $region54: #{tpu_custom_call.1} parent=11 // pred_check_branch
          %412 = sbr.rel (%p410) target = $region56
        $region55: #{tpu_custom_call.1} parent=11 // pred_region
          %s414 = ssub.s32 1024, 1024
          %415 = vsyncadd [#allocation9], %s414
          %s416 = sshll.u32 [#allocation10], 4
          %s417 = int_to_ptr.vmem [resolvable:$true] %s416
          %422 = dma.hbm_to_vmem [thread:$0]  %s11, 1024, %s417, [#allocation9], 64, 64, 4
        $region56: #{tpu_custom_call.1} parent=11 // pred_fallthru
          _
        // Predicated region
        $region57: #{tpu_custom_call.1} parent=11 // pred_check
          %p423 = pneg %p303
        $region58: #{tpu_custom_call.1} parent=11 // pred_check_branch
          %425 = sbr.rel (%p423) target = $region60
        $region59: #{tpu_custom_call.1} parent=11 // pred_region
          _
        $region60: #{tpu_custom_call.1} parent=11 // pred_fallthru
          _
      $region12: #{tpu_custom_call.1} parent=5 // pred_fallthru
        _
      %p426 = scmp.lt.s32.totalorder %s25, 2
      // Predicated region
      $region61: #{tpu_custom_call.1} parent=5 // pred_check
        %p427 = pneg %p426
      $region62: #{tpu_custom_call.1} parent=5 // pred_check_branch
        %429 = sbr.rel (%p427) target = $region64
      $region63: #{tpu_custom_call.1} parent=5 // pred_region
        // Predicated region
        $region65: #{tpu_custom_call.1} parent=63 // pred_check
          %p430 = pneg %p45
        $region66: #{tpu_custom_call.1} parent=63 // pred_check_branch
          %432 = sbr.rel (%p430) target = $region68
        $region67: #{tpu_custom_call.1} parent=63 // pred_region
          %s433 = smul.u32 16, %s25
          %p434 = scmp.lt.s32.totalorder %s433, 31
          %s435 = scalar_select %p434, %s433, 31
          %s436 = smul.addr %s435, 4
          %s437 = scalar_lea.vmem %s0, %s436
          %s438 = smul.u32 16, %s25
        $region68: #{tpu_custom_call.1} parent=63 // pred_fallthru
          _
      $region64: #{tpu_custom_call.1} parent=5 // pred_fallthru
        _
      %p439 = scmp.le.s32.totalorder 1, %s25
      %p440 = scmp.lt.s32.totalorder %s25, 3
      %p441 = pnand %p439, %p440
      %p442 = pneg %p441
      // Predicated region
      $region69: #{tpu_custom_call.1} parent=5 // pred_check
        _
      $region70: #{tpu_custom_call.1} parent=5 // pred_check_branch
        %444 = sbr.rel (%p441) target = $region72
      $region71: #{tpu_custom_call.1} parent=5 // pred_region
        %s445 = ssub.s32 %s25, 1
        // Predicated region
        $region73: #{tpu_custom_call.1} parent=71 // pred_check
          %p446 = pneg %p72
        $region74: #{tpu_custom_call.1} parent=71 // pred_check_branch
          %448 = sbr.rel (%p446) target = $region76
        $region75: #{tpu_custom_call.1} parent=71 // pred_region
          %449 = dma.done [#allocation3], 256
        $region76: #{tpu_custom_call.1} parent=71 // pred_fallthru
          _
        // Predicated region
        $region77: #{tpu_custom_call.1} parent=71 // pred_check
          %p450 = pneg %p177
        $region78: #{tpu_custom_call.1} parent=71 // pred_check_branch
          %452 = sbr.rel (%p450) target = $region80
        $region79: #{tpu_custom_call.1} parent=71 // pred_region
          %453 = dma.done [#allocation6], 16
        $region80: #{tpu_custom_call.1} parent=71 // pred_fallthru
          _
        // Predicated region
        $region81: #{tpu_custom_call.1} parent=71 // pred_check
          %p454 = pneg %p198
        $region82: #{tpu_custom_call.1} parent=71 // pred_check_branch
          %456 = sbr.rel (%p454) target = $region84
        $region83: #{tpu_custom_call.1} parent=71 // pred_region
          %457 = dma.done [#allocation6], 1024
        $region84: #{tpu_custom_call.1} parent=71 // pred_fallthru
          _
        // Predicated region
        $region85: #{tpu_custom_call.1} parent=71 // pred_check
          %p458 = pneg %p219
        $region86: #{tpu_custom_call.1} parent=71 // pred_check_branch
          %460 = sbr.rel (%p458) target = $region88
        $region87: #{tpu_custom_call.1} parent=71 // pred_region
          %461 = dma.done [#allocation9], 16
        $region88: #{tpu_custom_call.1} parent=71 // pred_fallthru
          _
        // Predicated region
        $region89: #{tpu_custom_call.1} parent=71 // pred_check
          %p462 = pneg %p282
        $region90: #{tpu_custom_call.1} parent=71 // pred_check_branch
          %464 = sbr.rel (%p462) target = $region92
        $region91: #{tpu_custom_call.1} parent=71 // pred_region
          %465 = dma.done [#allocation9], 1024
        $region92: #{tpu_custom_call.1} parent=71 // pred_fallthru
          _
        %s466 = smul.u32 16, %s30
        %p467 = scmp.lt.s32.totalorder %s466, 31
        %s468 = scalar_select %p467, %s466, 31
        %s469 = smul.addr %s468, 4
        %s470 = scalar_lea.vmem %s0, %s469
        %p471 = pneg %p51
        %p472 = pneg %p48
        %p473 = pneg %p72
        %p474 = pneg %p69
        %p475 = pneg %p93
        %p476 = pneg %p90
        %p477 = pneg %p114
        %p478 = pneg %p111
        %p479 = pneg %p135
        %p480 = pneg %p132
        %p481 = pneg %p156
        %p482 = pneg %p153
        %p483 = pneg %p177
        %p484 = pneg %p174
        %p485 = pneg %p198
        %p486 = pneg %p195
        %p487 = pneg %p219
        %p488 = pneg %p216
        %p489 = pneg %p240
        %p490 = pneg %p237
        %p491 = pneg %p261
        %p492 = pneg %p258
        %p493 = pneg %p282
        %p494 = pneg %p279
        %p495 = pneg %p303
        %p496 = pneg %p300
        %p497 = pneg %p329
        %p498 = pneg %p326
        %s499 = sand.u32 %s316, 1
        %s500 = scalar_lea.sflag [#allocation4], %s499
        %s501 = sand.u32 %s316, 1
        %s502 = smul.addr %s501, 64
        %s503 = scalar_lea.vmem [#allocation11], %s502
        %s504 = smul.u32 16, %s30
        %p505 = scmp.lt.s32.totalorder %s504, 31
        %s506 = scalar_select %p505, %s504, 31
        %s507 = smul.addr %s506, 4
        %s508 = scalar_lea.vmem %s0, %s507
        %s509 = smul.u32 16, %s30
        %s510 = smul.u32 16, %s30
        %v512 = vld [vmem:[%s508] sm:$0xf]
        %v513 = vld [vmem:[%s508 + $0x4] sm:$0xf]
        %v514 = vld [vmem:[%s508 + $0x8] sm:$0xf]
        %v515 = vld [vmem:[%s508 + $0xc] sm:$0xf]
        %v516 = vld [vmem:[%s508 + $0x10] sm:$0xf]
        %v517 = vld [vmem:[%s508 + $0x14] sm:$0xf]
        %v518 = vld [vmem:[%s508 + $0x18] sm:$0xf]
        %v519 = vld [vmem:[%s508 + $0x1c] sm:$0xf]
        %v520 = vld [vmem:[%s508 + $0x20] sm:$0xf]
        %v521 = vld [vmem:[%s508 + $0x24] sm:$0xf]
        %v522 = vld [vmem:[%s508 + $0x28] sm:$0xf]
        %v523 = vld [vmem:[%s508 + $0x2c] sm:$0xf]
        %v524 = vld [vmem:[%s508 + $0x30] sm:$0xf]
        %v525 = vld [vmem:[%s508 + $0x34] sm:$0xf]
        %v526 = vld [vmem:[%s508 + $0x38] sm:$0xf]
        %v527 = vld [vmem:[%s508 + $0x3c] sm:$0xf]
        %v528 = vld [vmem:[#allocation2] sm:$0xf]
        %v529 = vld [vmem:[#allocation2 + $0x4] sm:$0xf]
        %v530 = vld [vmem:[#allocation2 + $0x8] sm:$0xf]
        %v531 = vld [vmem:[#allocation2 + $0xc] sm:$0xf]
        %v532 = vld [vmem:[%s2] sm:$0x1]
        %v534 = vlaneseq
        %v535 = vshrl.u32 %v534, 7
        %v536 = vsub.s32 0, %v535
        %v537 = vrot.slane %v532, %v536
        %v555 = vunpack.c.l.b16 %v512
        %v556 = vunpack.c.l.b16 %v513
        %v557 = vunpack.c.l.b16 %v514
        %v558 = vunpack.c.l.b16 %v515
        %v559 = vunpack.c.l.b16 %v516
        %v560 = vunpack.c.l.b16 %v517
        %v561 = vunpack.c.l.b16 %v518
        %v562 = vunpack.c.l.b16 %v519
        %v563 = vunpack.c.l.b16 %v520
        %v564 = vunpack.c.l.b16 %v521
        %v565 = vunpack.c.l.b16 %v522
        %v566 = vunpack.c.l.b16 %v523
        %v567 = vunpack.c.l.b16 %v524
        %v568 = vunpack.c.l.b16 %v525
        %v569 = vunpack.c.l.b16 %v526
        %v570 = vunpack.c.l.b16 %v527
        %v571 = vpack.c.b16 %v556, %v555
        %v572 = vpack.c.b16 %v558, %v557
        %v573 = vpack.c.b16 %v560, %v559
        %v574 = vpack.c.b16 %v562, %v561
        %v575 = vpack.c.b16 %v564, %v563
        %v576 = vpack.c.b16 %v566, %v565
        %v577 = vpack.c.b16 %v568, %v567
        %v578 = vpack.c.b16 %v570, %v569
        %v583 = vunpack.c.l.b16 %v528
        %v584 = vunpack.c.l.b16 %v529
        %v585 = vunpack.c.l.b16 %v530
        %v586 = vunpack.c.l.b16 %v531
        %v587 = vpack.c.b16 %v584, %v583
        %v588 = vpack.c.b16 %v586, %v585
        %vm591 = vcmask 261120
        %v593 = vsel %vm591, %v571, 0
        %v596 = vsel %vm591, %v572, 0
        %v599 = vsel %vm591, %v573, 0
        %v602 = vsel %vm591, %v574, 0
        %v605 = vsel %vm591, %v575, 0
        %v608 = vsel %vm591, %v576, 0
        %v611 = vsel %vm591, %v577, 0
        %v614 = vsel %vm591, %v578, 0
        %616 = vmatprep.subr.bf16.mxu0 0
        %617 = vmatpush1.bf16.msra.mxu0 %v587
        %618 = vmatprep.subr.bf16.mxu0 0
        %619 = vmatpush1.bf16.msra.mxu0 %v588
        %620 = vmatprep.subr.bf16.mxu0 0
        %621 = vmatpush1.bf16.msra.mxu0 0
        %622 = vmatprep.subr.bf16.mxu0 0
        %623 = vmatpush1.bf16.msra.mxu0 0
        %624 = vmatprep.subr.bf16.mxu0 0
        %625 = vmatpush1.bf16.msra.mxu0 0
        %626 = vmatprep.subr.bf16.mxu0 0
        %627 = vmatpush1.bf16.msra.mxu0 0
        %628 = vmatprep.subr.bf16.mxu0 0
        %629 = vmatpush1.bf16.msra.mxu0 0
        %630 = vmatprep.subr.bf16.mxu0 0
        %631 = vmatpush1.bf16.msra.mxu0 0
        %632 = vmatprep.subr.bf16.mxu0 0
        %633 = vmatpush1.bf16.msra.mxu0 0
        %634 = vmatprep.subr.bf16.mxu0 0
        %635 = vmatpush1.bf16.msra.mxu0 0
        %636 = vmatprep.subr.bf16.mxu0 0
        %637 = vmatpush1.bf16.msra.mxu0 0
        %638 = vmatprep.subr.bf16.mxu0 0
        %639 = vmatpush1.bf16.msra.mxu0 0
        %640 = vmatprep.subr.bf16.mxu0 0
        %641 = vmatpush1.bf16.msra.mxu0 0
        %642 = vmatprep.subr.bf16.mxu0 0
        %643 = vmatpush1.bf16.msra.mxu0 0
        %644 = vmatprep.subr.bf16.mxu0 0
        %645 = vmatpush1.bf16.msra.mxu0 0
        %646 = vmatprep.subr.bf16.mxu0 0
        %647 = vmatpush1.bf16.msra.mxu0 0
        %648 = vmatprep.mubr.bf16.mxu0 0
        %649 = vmatmul.mubr.bf16.gmra.mrb[0].mxu0 %v593
        %v650 = vpop.f32.mrb[0].mxu0
        %v651 = vadd.f32 %v537, %v650
        %v652 = vpop.f32.mrb[0].mxu0
        %v653 = vpop.f32.mrb[0].mxu0
        %v654 = vadd.f32 %v537, %v653
        %v655 = vpop.f32.mrb[0].mxu0
        %656 = vmatprep.mubr.bf16.mxu0 0
        %657 = vmatmul.mubr.bf16.gmra.mrb[0].mxu0 %v596
        %v658 = vpop.f32.mrb[0].mxu0
        %v659 = vadd.f32 %v537, %v658
        %v660 = vpop.f32.mrb[0].mxu0
        %v661 = vpop.f32.mrb[0].mxu0
        %v662 = vadd.f32 %v537, %v661
        %v663 = vpop.f32.mrb[0].mxu0
        %664 = vmatprep.mubr.bf16.mxu0 0
        %665 = vmatmul.mubr.bf16.gmra.mrb[0].mxu0 %v599
        %v666 = vpop.f32.mrb[0].mxu0
        %v667 = vadd.f32 %v537, %v666
        %v668 = vpop.f32.mrb[0].mxu0
        %v669 = vpop.f32.mrb[0].mxu0
        %v670 = vadd.f32 %v537, %v669
        %v671 = vpop.f32.mrb[0].mxu0
        %672 = vmatprep.mubr.bf16.mxu0 0
        %673 = vmatmul.mubr.bf16.gmra.mrb[0].mxu0 %v602
        %v674 = vpop.f32.mrb[0].mxu0
        %v675 = vadd.f32 %v537, %v674
        %v676 = vpop.f32.mrb[0].mxu0
        %v677 = vpop.f32.mrb[0].mxu0
        %v678 = vadd.f32 %v537, %v677
        %v679 = vpop.f32.mrb[0].mxu0
        %680 = vmatprep.mubr.bf16.mxu0 0
        %681 = vmatmul.mubr.bf16.gmra.mrb[0].mxu0 %v605
        %v682 = vpop.f32.mrb[0].mxu0
        %v683 = vadd.f32 %v537, %v682
        %v684 = vpop.f32.mrb[0].mxu0
        %v685 = vpop.f32.mrb[0].mxu0
        %v686 = vadd.f32 %v537, %v685
        %v687 = vpop.f32.mrb[0].mxu0
        %688 = vmatprep.mubr.bf16.mxu0 0
        %689 = vmatmul.mubr.bf16.gmra.mrb[0].mxu0 %v608
        %v690 = vpop.f32.mrb[0].mxu0
        %v691 = vadd.f32 %v537, %v690
        %v692 = vpop.f32.mrb[0].mxu0
        %v693 = vpop.f32.mrb[0].mxu0
        %v694 = vadd.f32 %v537, %v693
        %v695 = vpop.f32.mrb[0].mxu0
        %696 = vmatprep.mubr.bf16.mxu0 0
        %697 = vmatmul.mubr.bf16.gmra.mrb[0].mxu0 %v611
        %v698 = vpop.f32.mrb[0].mxu0
        %v699 = vadd.f32 %v537, %v698
        %v700 = vpop.f32.mrb[0].mxu0
        %v701 = vpop.f32.mrb[0].mxu0
        %v702 = vadd.f32 %v537, %v701
        %v703 = vpop.f32.mrb[0].mxu0
        %704 = vmatprep.mubr.bf16.mxu0 0
        %705 = vmatmul.mubr.bf16.gmra.mrb[0].mxu0 %v614
        %v706 = vpop.f32.mrb[0].mxu0
        %v707 = vadd.f32 %v537, %v706
        %v708 = vpop.f32.mrb[0].mxu0
        %v709 = vpop.f32.mrb[0].mxu0
        %v710 = vadd.f32 %v537, %v709
        %v711 = vpop.f32.mrb[0].mxu0
        %712 = vdwg.mxu0
        %v713 = vmax.f32 %v651, 0.0
        %v714 = vmax.f32 %v654, 0.0
        %v715 = vmax.f32 %v659, 0.0
        %v716 = vmax.f32 %v662, 0.0
        %v717 = vmax.f32 %v667, 0.0
        %v718 = vmax.f32 %v670, 0.0
        %v719 = vmax.f32 %v675, 0.0
        %v720 = vmax.f32 %v678, 0.0
        %v721 = vmax.f32 %v683, 0.0
        %v722 = vmax.f32 %v686, 0.0
        %v723 = vmax.f32 %v691, 0.0
        %v724 = vmax.f32 %v694, 0.0
        %v725 = vmax.f32 %v699, 0.0
        %v726 = vmax.f32 %v702, 0.0
        %v727 = vmax.f32 %v707, 0.0
        %v728 = vmax.f32 %v710, 0.0
        %v729 = vld [vmem:[%s3] sm:$0xf]
        %v730 = vld [vmem:[%s3 + $0x4] sm:$0xf]
        %v731 = vld [vmem:[%s3 + $0x8] sm:$0xf]
        %v732 = vld [vmem:[%s3 + $0xc] sm:$0xf]
        %v733 = vld [vmem:[%s3 + $0x10] sm:$0xf]
        %v734 = vld [vmem:[%s3 + $0x14] sm:$0xf]
        %v735 = vld [vmem:[%s3 + $0x18] sm:$0xf]
        %v736 = vld [vmem:[%s3 + $0x1c] sm:$0xf]
        %v737 = vld [vmem:[%s3 + $0x20] sm:$0xf]
        %v738 = vld [vmem:[%s3 + $0x24] sm:$0xf]
        %v739 = vld [vmem:[%s3 + $0x28] sm:$0xf]
        %v740 = vld [vmem:[%s3 + $0x2c] sm:$0xf]
        %v741 = vld [vmem:[%s3 + $0x30] sm:$0xf]
        %v742 = vld [vmem:[%s3 + $0x34] sm:$0xf]
        %v743 = vld [vmem:[%s3 + $0x38] sm:$0xf]
        %v744 = vld [vmem:[%s3 + $0x3c] sm:$0xf]
        %v745 = vld [vmem:[%s4] sm:$0x1]
        %v746 = vpack.c.bf16 %v714, %v713
        %v747 = vpack.c.bf16 %v716, %v715
        %v748 = vpack.c.bf16 %v718, %v717
        %v749 = vpack.c.bf16 %v720, %v719
        %v750 = vpack.c.bf16 %v722, %v721
        %v751 = vpack.c.bf16 %v724, %v723
        %v752 = vpack.c.bf16 %v726, %v725
        %v753 = vpack.c.bf16 %v728, %v727
        %v755 = vlaneseq
        %v756 = vshrl.u32 %v755, 7
        %v757 = vsub.s32 0, %v756
        %v758 = vrot.slane %v745, %v757
        %v776 = vunpack.c.l.b16 %v729
        %v777 = vunpack.c.l.b16 %v730
        %v778 = vunpack.c.l.b16 %v731
        %v779 = vunpack.c.l.b16 %v732
        %v780 = vunpack.c.l.b16 %v733
        %v781 = vunpack.c.l.b16 %v734
        %v782 = vunpack.c.l.b16 %v735
        %v783 = vunpack.c.l.b16 %v736
        %v784 = vunpack.c.l.b16 %v737
        %v785 = vunpack.c.l.b16 %v738
        %v786 = vunpack.c.l.b16 %v739
        %v787 = vunpack.c.l.b16 %v740
        %v788 = vunpack.c.l.b16 %v741
        %v789 = vunpack.c.l.b16 %v742
        %v790 = vunpack.c.l.b16 %v743
        %v791 = vunpack.c.l.b16 %v744
        %v792 = vpack.c.b16 %v777, %v776
        %v793 = vpack.c.b16 %v779, %v778
        %v794 = vpack.c.b16 %v781, %v780
        %v795 = vpack.c.b16 %v783, %v782
        %v796 = vpack.c.b16 %v785, %v784
        %v797 = vpack.c.b16 %v787, %v786
        %v798 = vpack.c.b16 %v789, %v788
        %v799 = vpack.c.b16 %v791, %v790
        %808 = vmatprep.subr.bf16.mxu0 0
        %809 = vmatpush1.bf16.msra.mxu0 %v792
        %810 = vmatprep.subr.bf16.mxu0 0
        %811 = vmatpush1.bf16.msra.mxu0 %v793
        %812 = vmatprep.subr.bf16.mxu0 0
        %813 = vmatpush1.bf16.msra.mxu0 %v794
        %814 = vmatprep.subr.bf16.mxu0 0
        %815 = vmatpush1.bf16.msra.mxu0 %v795
        %816 = vmatprep.subr.bf16.mxu0 0
        %817 = vmatpush1.bf16.msra.mxu0 %v796
        %818 = vmatprep.subr.bf16.mxu0 0
        %819 = vmatpush1.bf16.msra.mxu0 %v797
        %820 = vmatprep.subr.bf16.mxu0 0
        %821 = vmatpush1.bf16.msra.mxu0 %v798
        %822 = vmatprep.subr.bf16.mxu0 0
        %823 = vmatpush1.bf16.msra.mxu0 %v799
        %824 = vmatprep.subr.bf16.mxu0 0
        %825 = vmatpush1.bf16.msra.mxu0 0
        %826 = vmatprep.subr.bf16.mxu0 0
        %827 = vmatpush1.bf16.msra.mxu0 0
        %828 = vmatprep.subr.bf16.mxu0 0
        %829 = vmatpush1.bf16.msra.mxu0 0
        %830 = vmatprep.subr.bf16.mxu0 0
        %831 = vmatpush1.bf16.msra.mxu0 0
        %832 = vmatprep.subr.bf16.mxu0 0
        %833 = vmatpush1.bf16.msra.mxu0 0
        %834 = vmatprep.subr.bf16.mxu0 0
        %835 = vmatpush1.bf16.msra.mxu0 0
        %836 = vmatprep.subr.bf16.mxu0 0
        %837 = vmatpush1.bf16.msra.mxu0 0
        %838 = vmatprep.subr.bf16.mxu0 0
        %839 = vmatpush1.bf16.msra.mxu0 0
        %840 = vmatprep.mubr.bf16.mxu0 0
        %841 = vmatmul.mubr.bf16.gmra.mrb[0].mxu0 %v746
        %v842 = vpop.f32.mrb[0].mxu0
        %v843 = vadd.f32 %v758, %v842
        %v844 = vpop.f32.mrb[0].mxu0
        %v845 = vpop.f32.mrb[0].mxu0
        %v846 = vadd.f32 %v758, %v845
        %v847 = vpop.f32.mrb[0].mxu0
        %848 = vmatprep.mubr.bf16.mxu0 0
        %849 = vmatmul.mubr.bf16.gmra.mrb[0].mxu0 %v747
        %v850 = vpop.f32.mrb[0].mxu0
        %v851 = vadd.f32 %v758, %v850
        %v852 = vpop.f32.mrb[0].mxu0
        %v853 = vpop.f32.mrb[0].mxu0
        %v854 = vadd.f32 %v758, %v853
        %v855 = vpop.f32.mrb[0].mxu0
        %856 = vmatprep.mubr.bf16.mxu0 0
        %857 = vmatmul.mubr.bf16.gmra.mrb[0].mxu0 %v748
        %v858 = vpop.f32.mrb[0].mxu0
        %v859 = vadd.f32 %v758, %v858
        %v860 = vpop.f32.mrb[0].mxu0
        %v861 = vpop.f32.mrb[0].mxu0
        %v862 = vadd.f32 %v758, %v861
        %v863 = vpop.f32.mrb[0].mxu0
        %864 = vmatprep.mubr.bf16.mxu0 0
        %865 = vmatmul.mubr.bf16.gmra.mrb[0].mxu0 %v749
        %v866 = vpop.f32.mrb[0].mxu0
        %v867 = vadd.f32 %v758, %v866
        %v868 = vpop.f32.mrb[0].mxu0
        %v869 = vpop.f32.mrb[0].mxu0
        %v870 = vadd.f32 %v758, %v869
        %v871 = vpop.f32.mrb[0].mxu0
        %872 = vmatprep.mubr.bf16.mxu0 0
        %873 = vmatmul.mubr.bf16.gmra.mrb[0].mxu0 %v750
        %v874 = vpop.f32.mrb[0].mxu0
        %v875 = vadd.f32 %v758, %v874
        %v876 = vpop.f32.mrb[0].mxu0
        %v877 = vpop.f32.mrb[0].mxu0
        %v878 = vadd.f32 %v758, %v877
        %v879 = vpop.f32.mrb[0].mxu0
        %880 = vmatprep.mubr.bf16.mxu0 0
        %881 = vmatmul.mubr.bf16.gmra.mrb[0].mxu0 %v751
        %v882 = vpop.f32.mrb[0].mxu0
        %v883 = vadd.f32 %v758, %v882
        %v884 = vpop.f32.mrb[0].mxu0
        %v885 = vpop.f32.mrb[0].mxu0
        %v886 = vadd.f32 %v758, %v885
        %v887 = vpop.f32.mrb[0].mxu0
        %888 = vmatprep.mubr.bf16.mxu0 0
        %889 = vmatmul.mubr.bf16.gmra.mrb[0].mxu0 %v752
        %v890 = vpop.f32.mrb[0].mxu0
        %v891 = vadd.f32 %v758, %v890
        %v892 = vpop.f32.mrb[0].mxu0
        %v893 = vpop.f32.mrb[0].mxu0
        %v894 = vadd.f32 %v758, %v893
        %v895 = vpop.f32.mrb[0].mxu0
        %896 = vmatprep.mubr.bf16.mxu0 0
        %897 = vmatmul.mubr.bf16.gmra.mrb[0].mxu0 %v753
        %v898 = vpop.f32.mrb[0].mxu0
        %v899 = vadd.f32 %v758, %v898
        %v900 = vpop.f32.mrb[0].mxu0
        %v901 = vpop.f32.mrb[0].mxu0
        %v902 = vadd.f32 %v758, %v901
        %v903 = vpop.f32.mrb[0].mxu0
        %904 = vdwg.mxu0
        %v905 = vmax.f32 %v843, 0.0
        %v906 = vmax.f32 %v846, 0.0
        %v907 = vmax.f32 %v851, 0.0
        %v908 = vmax.f32 %v854, 0.0
        %v909 = vmax.f32 %v859, 0.0
        %v910 = vmax.f32 %v862, 0.0
        %v911 = vmax.f32 %v867, 0.0
        %v912 = vmax.f32 %v870, 0.0
        %v913 = vmax.f32 %v875, 0.0
        %v914 = vmax.f32 %v878, 0.0
        %v915 = vmax.f32 %v883, 0.0
        %v916 = vmax.f32 %v886, 0.0
        %v917 = vmax.f32 %v891, 0.0
        %v918 = vmax.f32 %v894, 0.0
        %v919 = vmax.f32 %v899, 0.0
        %v920 = vmax.f32 %v902, 0.0
        %v921 = vld [vmem:[%s5] sm:$0xf]
        %v922 = vld [vmem:[%s5 + $0x4] sm:$0xf]
        %v923 = vld [vmem:[%s5 + $0x8] sm:$0xf]
        %v924 = vld [vmem:[%s5 + $0xc] sm:$0xf]
        %v925 = vld [vmem:[%s5 + $0x10] sm:$0xf]
        %v926 = vld [vmem:[%s5 + $0x14] sm:$0xf]
        %v927 = vld [vmem:[%s5 + $0x18] sm:$0xf]
        %v928 = vld [vmem:[%s5 + $0x1c] sm:$0xf]
        %v929 = vld [vmem:[%s5 + $0x20] sm:$0xf]
        %v930 = vld [vmem:[%s5 + $0x24] sm:$0xf]
        %v931 = vld [vmem:[%s5 + $0x28] sm:$0xf]
        %v932 = vld [vmem:[%s5 + $0x2c] sm:$0xf]
        %v933 = vld [vmem:[%s5 + $0x30] sm:$0xf]
        %v934 = vld [vmem:[%s5 + $0x34] sm:$0xf]
        %v935 = vld [vmem:[%s5 + $0x38] sm:$0xf]
        %v936 = vld [vmem:[%s5 + $0x3c] sm:$0xf]
        %v937 = vld [vmem:[#allocation5] sm:$0x1]
        %v938 = vpack.c.bf16 %v906, %v905
        %v939 = vpack.c.bf16 %v908, %v907
        %v940 = vpack.c.bf16 %v910, %v909
        %v941 = vpack.c.bf16 %v912, %v911
        %v942 = vpack.c.bf16 %v914, %v913
        %v943 = vpack.c.bf16 %v916, %v915
        %v944 = vpack.c.bf16 %v918, %v917
        %v945 = vpack.c.bf16 %v920, %v919
        %v947 = vlaneseq
        %v948 = vshrl.u32 %v947, 7
        %v949 = vsub.s32 0, %v948
        %v950 = vrot.slane %v937, %v949
        %v968 = vunpack.c.l.b16 %v921
        %v969 = vunpack.c.l.b16 %v922
        %v970 = vunpack.c.l.b16 %v923
        %v971 = vunpack.c.l.b16 %v924
        %v972 = vunpack.c.l.b16 %v925
        %v973 = vunpack.c.l.b16 %v926
        %v974 = vunpack.c.l.b16 %v927
        %v975 = vunpack.c.l.b16 %v928
        %v976 = vunpack.c.l.b16 %v929
        %v977 = vunpack.c.l.b16 %v930
        %v978 = vunpack.c.l.b16 %v931
        %v979 = vunpack.c.l.b16 %v932
        %v980 = vunpack.c.l.b16 %v933
        %v981 = vunpack.c.l.b16 %v934
        %v982 = vunpack.c.l.b16 %v935
        %v983 = vunpack.c.l.b16 %v936
        %v984 = vpack.c.b16 %v969, %v968
        %v985 = vpack.c.b16 %v971, %v970
        %v986 = vpack.c.b16 %v973, %v972
        %v987 = vpack.c.b16 %v975, %v974
        %v988 = vpack.c.b16 %v977, %v976
        %v989 = vpack.c.b16 %v979, %v978
        %v990 = vpack.c.b16 %v981, %v980
        %v991 = vpack.c.b16 %v983, %v982
        %1000 = vmatprep.subr.bf16.mxu0 0
        %1001 = vmatpush1.bf16.msra.mxu0 %v984
        %1002 = vmatprep.subr.bf16.mxu0 0
        %1003 = vmatpush1.bf16.msra.mxu0 %v985
        %1004 = vmatprep.subr.bf16.mxu0 0
        %1005 = vmatpush1.bf16.msra.mxu0 %v986
        %1006 = vmatprep.subr.bf16.mxu0 0
        %1007 = vmatpush1.bf16.msra.mxu0 %v987
        %1008 = vmatprep.subr.bf16.mxu0 0
        %1009 = vmatpush1.bf16.msra.mxu0 %v988
        %1010 = vmatprep.subr.bf16.mxu0 0
        %1011 = vmatpush1.bf16.msra.mxu0 %v989
        %1012 = vmatprep.subr.bf16.mxu0 0
        %1013 = vmatpush1.bf16.msra.mxu0 %v990
        %1014 = vmatprep.subr.bf16.mxu0 0
        %1015 = vmatpush1.bf16.msra.mxu0 %v991
        %1016 = vmatprep.subr.bf16.mxu0 0
        %1017 = vmatpush1.bf16.msra.mxu0 0
        %1018 = vmatprep.subr.bf16.mxu0 0
        %1019 = vmatpush1.bf16.msra.mxu0 0
        %1020 = vmatprep.subr.bf16.mxu0 0
        %1021 = vmatpush1.bf16.msra.mxu0 0
        %1022 = vmatprep.subr.bf16.mxu0 0
        %1023 = vmatpush1.bf16.msra.mxu0 0
        %1024 = vmatprep.subr.bf16.mxu0 0
        %1025 = vmatpush1.bf16.msra.mxu0 0
        %1026 = vmatprep.subr.bf16.mxu0 0
        %1027 = vmatpush1.bf16.msra.mxu0 0
        %1028 = vmatprep.subr.bf16.mxu0 0
        %1029 = vmatpush1.bf16.msra.mxu0 0
        %1030 = vmatprep.subr.bf16.mxu0 0
        %1031 = vmatpush1.bf16.msra.mxu0 0
        %1032 = vmatprep.mubr.bf16.mxu0 0
        %1033 = vmatmul.mubr.bf16.gmra.mrb[0].mxu0 %v938
        %v1034 = vpop.f32.mrb[0].mxu0
        %v1035 = vadd.f32 %v950, %v1034
        %v1036 = vpop.f32.mrb[0].mxu0
        %v1037 = vpop.f32.mrb[0].mxu0
        %v1038 = vadd.f32 %v950, %v1037
        %v1039 = vpop.f32.mrb[0].mxu0
        %1040 = vmatprep.mubr.bf16.mxu0 0
        %1041 = vmatmul.mubr.bf16.gmra.mrb[0].mxu0 %v939
        %v1042 = vpop.f32.mrb[0].mxu0
        %v1043 = vadd.f32 %v950, %v1042
        %v1044 = vpop.f32.mrb[0].mxu0
        %v1045 = vpop.f32.mrb[0].mxu0
        %v1046 = vadd.f32 %v950, %v1045
        %v1047 = vpop.f32.mrb[0].mxu0
        %1048 = vmatprep.mubr.bf16.mxu0 0
        %1049 = vmatmul.mubr.bf16.gmra.mrb[0].mxu0 %v940
        %v1050 = vpop.f32.mrb[0].mxu0
        %v1051 = vadd.f32 %v950, %v1050
        %v1052 = vpop.f32.mrb[0].mxu0
        %v1053 = vpop.f32.mrb[0].mxu0
        %v1054 = vadd.f32 %v950, %v1053
        %v1055 = vpop.f32.mrb[0].mxu0
        %1056 = vmatprep.mubr.bf16.mxu0 0
        %1057 = vmatmul.mubr.bf16.gmra.mrb[0].mxu0 %v941
        %v1058 = vpop.f32.mrb[0].mxu0
        %v1059 = vadd.f32 %v950, %v1058
        %v1060 = vpop.f32.mrb[0].mxu0
        %v1061 = vpop.f32.mrb[0].mxu0
        %v1062 = vadd.f32 %v950, %v1061
        %v1063 = vpop.f32.mrb[0].mxu0
        %1064 = vmatprep.mubr.bf16.mxu0 0
        %1065 = vmatmul.mubr.bf16.gmra.mrb[0].mxu0 %v942
        %v1066 = vpop.f32.mrb[0].mxu0
        %v1067 = vadd.f32 %v950, %v1066
        %v1068 = vpop.f32.mrb[0].mxu0
        %v1069 = vpop.f32.mrb[0].mxu0
        %v1070 = vadd.f32 %v950, %v1069
        %v1071 = vpop.f32.mrb[0].mxu0
        %1072 = vmatprep.mubr.bf16.mxu0 0
        %1073 = vmatmul.mubr.bf16.gmra.mrb[0].mxu0 %v943
        %v1074 = vpop.f32.mrb[0].mxu0
        %v1075 = vadd.f32 %v950, %v1074
        %v1076 = vpop.f32.mrb[0].mxu0
        %v1077 = vpop.f32.mrb[0].mxu0
        %v1078 = vadd.f32 %v950, %v1077
        %v1079 = vpop.f32.mrb[0].mxu0
        %1080 = vmatprep.mubr.bf16.mxu0 0
        %1081 = vmatmul.mubr.bf16.gmra.mrb[0].mxu0 %v944
        %v1082 = vpop.f32.mrb[0].mxu0
        %v1083 = vadd.f32 %v950, %v1082
        %v1084 = vpop.f32.mrb[0].mxu0
        %v1085 = vpop.f32.mrb[0].mxu0
        %v1086 = vadd.f32 %v950, %v1085
        %v1087 = vpop.f32.mrb[0].mxu0
        %1088 = vmatprep.mubr.bf16.mxu0 0
        %1089 = vmatmul.mubr.bf16.gmra.mrb[0].mxu0 %v945
        %v1090 = vpop.f32.mrb[0].mxu0
        %v1091 = vadd.f32 %v950, %v1090
        %v1092 = vpop.f32.mrb[0].mxu0
        %v1093 = vpop.f32.mrb[0].mxu0
        %v1094 = vadd.f32 %v950, %v1093
        %v1095 = vpop.f32.mrb[0].mxu0
        %1096 = vdwg.mxu0
        %v1097 = vsub.f32 0.0, %v1035
        %v1098 = vsub.f32 0.0, %v1038
        %v1099 = vsub.f32 0.0, %v1043
        %v1100 = vsub.f32 0.0, %v1046
        %v1101 = vsub.f32 0.0, %v1051
        %v1102 = vsub.f32 0.0, %v1054
        %v1103 = vsub.f32 0.0, %v1059
        %v1104 = vsub.f32 0.0, %v1062
        %v1105 = vsub.f32 0.0, %v1067
        %v1106 = vsub.f32 0.0, %v1070
        %v1107 = vsub.f32 0.0, %v1075
        %v1108 = vsub.f32 0.0, %v1078
        %v1109 = vsub.f32 0.0, %v1083
        %v1110 = vsub.f32 0.0, %v1086
        %v1111 = vsub.f32 0.0, %v1091
        %v1112 = vsub.f32 0.0, %v1094
        %v1113 = vmul.f32 %v1097, 1.442695
        %v1114 = vpow.pop %v1113
        %v1115 = vmul.f32 %v1098, 1.442695
        %v1116 = vpow.pop %v1115
        %v1117 = vmul.f32 %v1099, 1.442695
        %v1118 = vpow.pop %v1117
        %v1119 = vmul.f32 %v1100, 1.442695
        %v1120 = vpow.pop %v1119
        %v1121 = vmul.f32 %v1101, 1.442695
        %v1122 = vpow.pop %v1121
        %v1123 = vmul.f32 %v1102, 1.442695
        %v1124 = vpow.pop %v1123
        %v1125 = vmul.f32 %v1103, 1.442695
        %v1126 = vpow.pop %v1125
        %v1127 = vmul.f32 %v1104, 1.442695
        %v1128 = vpow.pop %v1127
        %v1129 = vmul.f32 %v1105, 1.442695
        %v1130 = vpow.pop %v1129
        %v1131 = vmul.f32 %v1106, 1.442695
        %v1132 = vpow.pop %v1131
        %v1133 = vmul.f32 %v1107, 1.442695
        %v1134 = vpow.pop %v1133
        %v1135 = vmul.f32 %v1108, 1.442695
        %v1136 = vpow.pop %v1135
        %v1137 = vmul.f32 %v1109, 1.442695
        %v1138 = vpow.pop %v1137
        %v1139 = vmul.f32 %v1110, 1.442695
        %v1140 = vpow.pop %v1139
        %v1141 = vmul.f32 %v1111, 1.442695
        %v1142 = vpow.pop %v1141
        %v1143 = vmul.f32 %v1112, 1.442695
        %v1144 = vpow.pop %v1143
        %v1145 = vadd.f32 %v1114, 1.0
        %v1146 = vadd.f32 %v1116, 1.0
        %v1147 = vadd.f32 %v1118, 1.0
        %v1148 = vadd.f32 %v1120, 1.0
        %v1149 = vadd.f32 %v1122, 1.0
        %v1150 = vadd.f32 %v1124, 1.0
        %v1151 = vadd.f32 %v1126, 1.0
        %v1152 = vadd.f32 %v1128, 1.0
        %v1153 = vadd.f32 %v1130, 1.0
        %v1154 = vadd.f32 %v1132, 1.0
        %v1155 = vadd.f32 %v1134, 1.0
        %v1156 = vadd.f32 %v1136, 1.0
        %v1157 = vadd.f32 %v1138, 1.0
        %v1158 = vadd.f32 %v1140, 1.0
        %v1159 = vadd.f32 %v1142, 1.0
        %v1160 = vadd.f32 %v1144, 1.0
        %v1161 = vrcp.pop %v1145
        %v1162 = vrcp.pop %v1146
        %v1163 = vrcp.pop %v1147
        %v1164 = vrcp.pop %v1148
        %v1165 = vrcp.pop %v1149
        %v1166 = vrcp.pop %v1150
        %v1167 = vrcp.pop %v1151
        %v1168 = vrcp.pop %v1152
        %v1169 = vrcp.pop %v1153
        %v1170 = vrcp.pop %v1154
        %v1171 = vrcp.pop %v1155
        %v1172 = vrcp.pop %v1156
        %v1173 = vrcp.pop %v1157
        %v1174 = vrcp.pop %v1158
        %v1175 = vrcp.pop %v1159
        %v1176 = vrcp.pop %v1160
        %v1177 = vld [vmem:[#allocation7] sm:$0xf]
        %v1178 = vld [vmem:[#allocation7 + $0x4] sm:$0xf]
        %v1179 = vld [vmem:[#allocation7 + $0x8] sm:$0xf]
        %v1180 = vld [vmem:[#allocation7 + $0xc] sm:$0xf]
        %v1181 = vld [vmem:[#allocation7 + $0x10] sm:$0xf]
        %v1182 = vld [vmem:[#allocation7 + $0x14] sm:$0xf]
        %v1183 = vld [vmem:[#allocation7 + $0x18] sm:$0xf]
        %v1184 = vld [vmem:[#allocation7 + $0x1c] sm:$0xf]
        %v1185 = vld [vmem:[#allocation7 + $0x20] sm:$0xf]
        %v1186 = vld [vmem:[#allocation7 + $0x24] sm:$0xf]
        %v1187 = vld [vmem:[#allocation7 + $0x28] sm:$0xf]
        %v1188 = vld [vmem:[#allocation7 + $0x2c] sm:$0xf]
        %v1189 = vld [vmem:[#allocation7 + $0x30] sm:$0xf]
        %v1190 = vld [vmem:[#allocation7 + $0x34] sm:$0xf]
        %v1191 = vld [vmem:[#allocation7 + $0x38] sm:$0xf]
        %v1192 = vld [vmem:[#allocation7 + $0x3c] sm:$0xf]
        %v1193 = vld [vmem:[#allocation8] sm:$0x1]
        %v1194 = vpack.c.bf16 %v1162, %v1161
        %v1195 = vpack.c.bf16 %v1164, %v1163
        %v1196 = vpack.c.bf16 %v1166, %v1165
        %v1197 = vpack.c.bf16 %v1168, %v1167
        %v1198 = vpack.c.bf16 %v1170, %v1169
        %v1199 = vpack.c.bf16 %v1172, %v1171
        %v1200 = vpack.c.bf16 %v1174, %v1173
        %v1201 = vpack.c.bf16 %v1176, %v1175
        %v1203 = vlaneseq
        %v1204 = vshrl.u32 %v1203, 7
        %v1205 = vsub.s32 0, %v1204
        %v1206 = vrot.slane %v1193, %v1205
        %v1224 = vunpack.c.l.b16 %v1177
        %v1225 = vunpack.c.l.b16 %v1178
        %v1226 = vunpack.c.l.b16 %v1179
        %v1227 = vunpack.c.l.b16 %v1180
        %v1228 = vunpack.c.l.b16 %v1181
        %v1229 = vunpack.c.l.b16 %v1182
        %v1230 = vunpack.c.l.b16 %v1183
        %v1231 = vunpack.c.l.b16 %v1184
        %v1232 = vunpack.c.l.b16 %v1185
        %v1233 = vunpack.c.l.b16 %v1186
        %v1234 = vunpack.c.l.b16 %v1187
        %v1235 = vunpack.c.l.b16 %v1188
        %v1236 = vunpack.c.l.b16 %v1189
        %v1237 = vunpack.c.l.b16 %v1190
        %v1238 = vunpack.c.l.b16 %v1191
        %v1239 = vunpack.c.l.b16 %v1192
        %v1240 = vpack.c.b16 %v1225, %v1224
        %v1241 = vpack.c.b16 %v1227, %v1226
        %v1242 = vpack.c.b16 %v1229, %v1228
        %v1243 = vpack.c.b16 %v1231, %v1230
        %v1244 = vpack.c.b16 %v1233, %v1232
        %v1245 = vpack.c.b16 %v1235, %v1234
        %v1246 = vpack.c.b16 %v1237, %v1236
        %v1247 = vpack.c.b16 %v1239, %v1238
        %1256 = vmatprep.subr.bf16.mxu0 0
        %1257 = vmatpush1.bf16.msra.mxu0 %v1240
        %1258 = vmatprep.subr.bf16.mxu0 0
        %1259 = vmatpush1.bf16.msra.mxu0 %v1241
        %1260 = vmatprep.subr.bf16.mxu0 0
        %1261 = vmatpush1.bf16.msra.mxu0 %v1242
        %1262 = vmatprep.subr.bf16.mxu0 0
        %1263 = vmatpush1.bf16.msra.mxu0 %v1243
        %1264 = vmatprep.subr.bf16.mxu0 0
        %1265 = vmatpush1.bf16.msra.mxu0 %v1244
        %1266 = vmatprep.subr.bf16.mxu0 0
        %1267 = vmatpush1.bf16.msra.mxu0 %v1245
        %1268 = vmatprep.subr.bf16.mxu0 0
        %1269 = vmatpush1.bf16.msra.mxu0 %v1246
        %1270 = vmatprep.subr.bf16.mxu0 0
        %1271 = vmatpush1.bf16.msra.mxu0 %v1247
        %1272 = vmatprep.subr.bf16.mxu0 0
        %1273 = vmatpush1.bf16.msra.mxu0 0
        %1274 = vmatprep.subr.bf16.mxu0 0
        %1275 = vmatpush1.bf16.msra.mxu0 0
        %1276 = vmatprep.subr.bf16.mxu0 0
        %1277 = vmatpush1.bf16.msra.mxu0 0
        %1278 = vmatprep.subr.bf16.mxu0 0
        %1279 = vmatpush1.bf16.msra.mxu0 0
        %1280 = vmatprep.subr.bf16.mxu0 0
        %1281 = vmatpush1.bf16.msra.mxu0 0
        %1282 = vmatprep.subr.bf16.mxu0 0
        %1283 = vmatpush1.bf16.msra.mxu0 0
        %1284 = vmatprep.subr.bf16.mxu0 0
        %1285 = vmatpush1.bf16.msra.mxu0 0
        %1286 = vmatprep.subr.bf16.mxu0 0
        %1287 = vmatpush1.bf16.msra.mxu0 0
        %1288 = vmatprep.mubr.bf16.mxu0 0
        %1289 = vmatmul.mubr.bf16.gmra.mrb[0].mxu0 %v1194
        %v1290 = vpop.f32.mrb[0].mxu0
        %v1291 = vadd.f32 %v1206, %v1290
        %v1292 = vpop.f32.mrb[0].mxu0
        %v1293 = vpop.f32.mrb[0].mxu0
        %v1294 = vadd.f32 %v1206, %v1293
        %v1295 = vpop.f32.mrb[0].mxu0
        %1296 = vmatprep.mubr.bf16.mxu0 0
        %1297 = vmatmul.mubr.bf16.gmra.mrb[0].mxu0 %v1195
        %v1298 = vpop.f32.mrb[0].mxu0
        %v1299 = vadd.f32 %v1206, %v1298
        %v1300 = vpop.f32.mrb[0].mxu0
        %v1301 = vpop.f32.mrb[0].mxu0
        %v1302 = vadd.f32 %v1206, %v1301
        %v1303 = vpop.f32.mrb[0].mxu0
        %1304 = vmatprep.mubr.bf16.mxu0 0
        %1305 = vmatmul.mubr.bf16.gmra.mrb[0].mxu0 %v1196
        %v1306 = vpop.f32.mrb[0].mxu0
        %v1307 = vadd.f32 %v1206, %v1306
        %v1308 = vpop.f32.mrb[0].mxu0
        %v1309 = vpop.f32.mrb[0].mxu0
        %v1310 = vadd.f32 %v1206, %v1309
        %v1311 = vpop.f32.mrb[0].mxu0
        %1312 = vmatprep.mubr.bf16.mxu0 0
        %1313 = vmatmul.mubr.bf16.gmra.mrb[0].mxu0 %v1197
        %v1314 = vpop.f32.mrb[0].mxu0
        %v1315 = vadd.f32 %v1206, %v1314
        %v1316 = vpop.f32.mrb[0].mxu0
        %v1317 = vpop.f32.mrb[0].mxu0
        %v1318 = vadd.f32 %v1206, %v1317
        %v1319 = vpop.f32.mrb[0].mxu0
        %1320 = vmatprep.mubr.bf16.mxu0 0
        %1321 = vmatmul.mubr.bf16.gmra.mrb[0].mxu0 %v1198
        %v1322 = vpop.f32.mrb[0].mxu0
        %v1323 = vadd.f32 %v1206, %v1322
        %v1324 = vpop.f32.mrb[0].mxu0
        %v1325 = vpop.f32.mrb[0].mxu0
        %v1326 = vadd.f32 %v1206, %v1325
        %v1327 = vpop.f32.mrb[0].mxu0
        %1328 = vmatprep.mubr.bf16.mxu0 0
        %1329 = vmatmul.mubr.bf16.gmra.mrb[0].mxu0 %v1199
        %v1330 = vpop.f32.mrb[0].mxu0
        %v1331 = vadd.f32 %v1206, %v1330
        %v1332 = vpop.f32.mrb[0].mxu0
        %v1333 = vpop.f32.mrb[0].mxu0
        %v1334 = vadd.f32 %v1206, %v1333
        %v1335 = vpop.f32.mrb[0].mxu0
        %1336 = vmatprep.mubr.bf16.mxu0 0
        %1337 = vmatmul.mubr.bf16.gmra.mrb[0].mxu0 %v1200
        %v1338 = vpop.f32.mrb[0].mxu0
        %v1339 = vadd.f32 %v1206, %v1338
        %v1340 = vpop.f32.mrb[0].mxu0
        %v1341 = vpop.f32.mrb[0].mxu0
        %v1342 = vadd.f32 %v1206, %v1341
        %v1343 = vpop.f32.mrb[0].mxu0
        %1344 = vmatprep.mubr.bf16.mxu0 0
        %1345 = vmatmul.mubr.bf16.gmra.mrb[0].mxu0 %v1201
        %v1346 = vpop.f32.mrb[0].mxu0
        %v1347 = vadd.f32 %v1206, %v1346
        %v1348 = vpop.f32.mrb[0].mxu0
        %v1349 = vpop.f32.mrb[0].mxu0
        %v1350 = vadd.f32 %v1206, %v1349
        %v1351 = vpop.f32.mrb[0].mxu0
        %1352 = vdwg.mxu0
        %v1353 = vmax.f32 %v1291, 0.0
        %v1354 = vmax.f32 %v1294, 0.0
        %v1355 = vmax.f32 %v1299, 0.0
        %v1356 = vmax.f32 %v1302, 0.0
        %v1357 = vmax.f32 %v1307, 0.0
        %v1358 = vmax.f32 %v1310, 0.0
        %v1359 = vmax.f32 %v1315, 0.0
        %v1360 = vmax.f32 %v1318, 0.0
        %v1361 = vmax.f32 %v1323, 0.0
        %v1362 = vmax.f32 %v1326, 0.0
        %v1363 = vmax.f32 %v1331, 0.0
        %v1364 = vmax.f32 %v1334, 0.0
        %v1365 = vmax.f32 %v1339, 0.0
        %v1366 = vmax.f32 %v1342, 0.0
        %v1367 = vmax.f32 %v1347, 0.0
        %v1368 = vmax.f32 %v1350, 0.0
        %v1369 = vld [vmem:[%s9] sm:$0xf]
        %v1370 = vld [vmem:[%s9 + $0x4] sm:$0xf]
        %v1371 = vld [vmem:[%s9 + $0x8] sm:$0xf]
        %v1372 = vld [vmem:[%s9 + $0xc] sm:$0xf]
        %v1373 = vld [vmem:[%s9 + $0x10] sm:$0xf]
        %v1374 = vld [vmem:[%s9 + $0x14] sm:$0xf]
        %v1375 = vld [vmem:[%s9 + $0x18] sm:$0xf]
        %v1376 = vld [vmem:[%s9 + $0x1c] sm:$0xf]
        %v1377 = vld [vmem:[%s9 + $0x20] sm:$0xf]
        %v1378 = vld [vmem:[%s9 + $0x24] sm:$0xf]
        %v1379 = vld [vmem:[%s9 + $0x28] sm:$0xf]
        %v1380 = vld [vmem:[%s9 + $0x2c] sm:$0xf]
        %v1381 = vld [vmem:[%s9 + $0x30] sm:$0xf]
        %v1382 = vld [vmem:[%s9 + $0x34] sm:$0xf]
        %v1383 = vld [vmem:[%s9 + $0x38] sm:$0xf]
        %v1384 = vld [vmem:[%s9 + $0x3c] sm:$0xf]
        %v1385 = vld [vmem:[%s10] sm:$0x1]
        %v1386 = vpack.c.bf16 %v1354, %v1353
        %v1387 = vpack.c.bf16 %v1356, %v1355
        %v1388 = vpack.c.bf16 %v1358, %v1357
        %v1389 = vpack.c.bf16 %v1360, %v1359
        %v1390 = vpack.c.bf16 %v1362, %v1361
        %v1391 = vpack.c.bf16 %v1364, %v1363
        %v1392 = vpack.c.bf16 %v1366, %v1365
        %v1393 = vpack.c.bf16 %v1368, %v1367
        %v1395 = vlaneseq
        %v1396 = vshrl.u32 %v1395, 7
        %v1397 = vsub.s32 0, %v1396
        %v1398 = vrot.slane %v1385, %v1397
        %v1416 = vunpack.c.l.b16 %v1369
        %v1417 = vunpack.c.l.b16 %v1370
        %v1418 = vunpack.c.l.b16 %v1371
        %v1419 = vunpack.c.l.b16 %v1372
        %v1420 = vunpack.c.l.b16 %v1373
        %v1421 = vunpack.c.l.b16 %v1374
        %v1422 = vunpack.c.l.b16 %v1375
        %v1423 = vunpack.c.l.b16 %v1376
        %v1424 = vunpack.c.l.b16 %v1377
        %v1425 = vunpack.c.l.b16 %v1378
        %v1426 = vunpack.c.l.b16 %v1379
        %v1427 = vunpack.c.l.b16 %v1380
        %v1428 = vunpack.c.l.b16 %v1381
        %v1429 = vunpack.c.l.b16 %v1382
        %v1430 = vunpack.c.l.b16 %v1383
        %v1431 = vunpack.c.l.b16 %v1384
        %v1432 = vpack.c.b16 %v1417, %v1416
        %v1433 = vpack.c.b16 %v1419, %v1418
        %v1434 = vpack.c.b16 %v1421, %v1420
        %v1435 = vpack.c.b16 %v1423, %v1422
        %v1436 = vpack.c.b16 %v1425, %v1424
        %v1437 = vpack.c.b16 %v1427, %v1426
        %v1438 = vpack.c.b16 %v1429, %v1428
        %v1439 = vpack.c.b16 %v1431, %v1430
        %1448 = vmatprep.subr.bf16.mxu0 0
        %1449 = vmatpush1.bf16.msra.mxu0 %v1432
        %1450 = vmatprep.subr.bf16.mxu0 0
        %1451 = vmatpush1.bf16.msra.mxu0 %v1433
        %1452 = vmatprep.subr.bf16.mxu0 0
        %1453 = vmatpush1.bf16.msra.mxu0 %v1434
        %1454 = vmatprep.subr.bf16.mxu0 0
        %1455 = vmatpush1.bf16.msra.mxu0 %v1435
        %1456 = vmatprep.subr.bf16.mxu0 0
        %1457 = vmatpush1.bf16.msra.mxu0 %v1436
        %1458 = vmatprep.subr.bf16.mxu0 0
        %1459 = vmatpush1.bf16.msra.mxu0 %v1437
        %1460 = vmatprep.subr.bf16.mxu0 0
        %1461 = vmatpush1.bf16.msra.mxu0 %v1438
        %1462 = vmatprep.subr.bf16.mxu0 0
        %1463 = vmatpush1.bf16.msra.mxu0 %v1439
        %1464 = vmatprep.subr.bf16.mxu0 0
        %1465 = vmatpush1.bf16.msra.mxu0 0
        %1466 = vmatprep.subr.bf16.mxu0 0
        %1467 = vmatpush1.bf16.msra.mxu0 0
        %1468 = vmatprep.subr.bf16.mxu0 0
        %1469 = vmatpush1.bf16.msra.mxu0 0
        %1470 = vmatprep.subr.bf16.mxu0 0
        %1471 = vmatpush1.bf16.msra.mxu0 0
        %1472 = vmatprep.subr.bf16.mxu0 0
        %1473 = vmatpush1.bf16.msra.mxu0 0
        %1474 = vmatprep.subr.bf16.mxu0 0
        %1475 = vmatpush1.bf16.msra.mxu0 0
        %1476 = vmatprep.subr.bf16.mxu0 0
        %1477 = vmatpush1.bf16.msra.mxu0 0
        %1478 = vmatprep.subr.bf16.mxu0 0
        %1479 = vmatpush1.bf16.msra.mxu0 0
        %1480 = vmatprep.mubr.bf16.mxu0 0
        %1481 = vmatmul.mubr.bf16.gmra.mrb[0].mxu0 %v1386
        %v1482 = vpop.f32.mrb[0].mxu0
        %v1483 = vadd.f32 %v1398, %v1482
        %v1484 = vpop.f32.mrb[0].mxu0
        %v1485 = vpop.f32.mrb[0].mxu0
        %v1486 = vadd.f32 %v1398, %v1485
        %v1487 = vpop.f32.mrb[0].mxu0
        %1488 = vmatprep.mubr.bf16.mxu0 0
        %1489 = vmatmul.mubr.bf16.gmra.mrb[0].mxu0 %v1387
        %v1490 = vpop.f32.mrb[0].mxu0
        %v1491 = vadd.f32 %v1398, %v1490
        %v1492 = vpop.f32.mrb[0].mxu0
        %v1493 = vpop.f32.mrb[0].mxu0
        %v1494 = vadd.f32 %v1398, %v1493
        %v1495 = vpop.f32.mrb[0].mxu0
        %1496 = vmatprep.mubr.bf16.mxu0 0
        %1497 = vmatmul.mubr.bf16.gmra.mrb[0].mxu0 %v1388
        %v1498 = vpop.f32.mrb[0].mxu0
        %v1499 = vadd.f32 %v1398, %v1498
        %v1500 = vpop.f32.mrb[0].mxu0
        %v1501 = vpop.f32.mrb[0].mxu0
        %v1502 = vadd.f32 %v1398, %v1501
        %v1503 = vpop.f32.mrb[0].mxu0
        %1504 = vmatprep.mubr.bf16.mxu0 0
        %1505 = vmatmul.mubr.bf16.gmra.mrb[0].mxu0 %v1389
        %v1506 = vpop.f32.mrb[0].mxu0
        %v1507 = vadd.f32 %v1398, %v1506
        %v1508 = vpop.f32.mrb[0].mxu0
        %v1509 = vpop.f32.mrb[0].mxu0
        %v1510 = vadd.f32 %v1398, %v1509
        %v1511 = vpop.f32.mrb[0].mxu0
        %1512 = vmatprep.mubr.bf16.mxu0 0
        %1513 = vmatmul.mubr.bf16.gmra.mrb[0].mxu0 %v1390
        %v1514 = vpop.f32.mrb[0].mxu0
        %v1515 = vadd.f32 %v1398, %v1514
        %v1516 = vpop.f32.mrb[0].mxu0
        %v1517 = vpop.f32.mrb[0].mxu0
        %v1518 = vadd.f32 %v1398, %v1517
        %v1519 = vpop.f32.mrb[0].mxu0
        %1520 = vmatprep.mubr.bf16.mxu0 0
        %1521 = vmatmul.mubr.bf16.gmra.mrb[0].mxu0 %v1391
        %v1522 = vpop.f32.mrb[0].mxu0
        %v1523 = vadd.f32 %v1398, %v1522
        %v1524 = vpop.f32.mrb[0].mxu0
        %v1525 = vpop.f32.mrb[0].mxu0
        %v1526 = vadd.f32 %v1398, %v1525
        %v1527 = vpop.f32.mrb[0].mxu0
        %1528 = vmatprep.mubr.bf16.mxu0 0
        %1529 = vmatmul.mubr.bf16.gmra.mrb[0].mxu0 %v1392
        %v1530 = vpop.f32.mrb[0].mxu0
        %v1531 = vadd.f32 %v1398, %v1530
        %v1532 = vpop.f32.mrb[0].mxu0
        %v1533 = vpop.f32.mrb[0].mxu0
        %v1534 = vadd.f32 %v1398, %v1533
        %v1535 = vpop.f32.mrb[0].mxu0
        %1536 = vmatprep.mubr.bf16.mxu0 0
        %1537 = vmatmul.mubr.bf16.gmra.mrb[0].mxu0 %v1393
        %v1538 = vpop.f32.mrb[0].mxu0
        %v1539 = vadd.f32 %v1398, %v1538
        %v1540 = vpop.f32.mrb[0].mxu0
        %v1541 = vpop.f32.mrb[0].mxu0
        %v1542 = vadd.f32 %v1398, %v1541
        %v1543 = vpop.f32.mrb[0].mxu0
        %1544 = vdwg.mxu0
        %v1545 = vmax.f32 %v1483, 0.0
        %v1546 = vmax.f32 %v1486, 0.0
        %v1547 = vmax.f32 %v1491, 0.0
        %v1548 = vmax.f32 %v1494, 0.0
        %v1549 = vmax.f32 %v1499, 0.0
        %v1550 = vmax.f32 %v1502, 0.0
        %v1551 = vmax.f32 %v1507, 0.0
        %v1552 = vmax.f32 %v1510, 0.0
        %v1553 = vmax.f32 %v1515, 0.0
        %v1554 = vmax.f32 %v1518, 0.0
        %v1555 = vmax.f32 %v1523, 0.0
        %v1556 = vmax.f32 %v1526, 0.0
        %v1557 = vmax.f32 %v1531, 0.0
        %v1558 = vmax.f32 %v1534, 0.0
        %v1559 = vmax.f32 %v1539, 0.0
        %v1560 = vmax.f32 %v1542, 0.0
        %v1561 = vld [vmem:[#allocation10] sm:$0xf]
        %v1562 = vld [vmem:[#allocation10 + $0x4] sm:$0xf]
        %v1563 = vld [vmem:[#allocation10 + $0x8] sm:$0xf]
        %v1564 = vld [vmem:[#allocation10 + $0xc] sm:$0xf]
        %v1565 = vld [vmem:[#allocation10 + $0x10] sm:$0xf]
        %v1566 = vld [vmem:[#allocation10 + $0x14] sm:$0xf]
        %v1567 = vld [vmem:[#allocation10 + $0x18] sm:$0xf]
        %v1568 = vld [vmem:[#allocation10 + $0x1c] sm:$0xf]
        %v1569 = vld [vmem:[#allocation10 + $0x20] sm:$0xf]
        %v1570 = vld [vmem:[#allocation10 + $0x24] sm:$0xf]
        %v1571 = vld [vmem:[#allocation10 + $0x28] sm:$0xf]
        %v1572 = vld [vmem:[#allocation10 + $0x2c] sm:$0xf]
        %v1573 = vld [vmem:[#allocation10 + $0x30] sm:$0xf]
        %v1574 = vld [vmem:[#allocation10 + $0x34] sm:$0xf]
        %v1575 = vld [vmem:[#allocation10 + $0x38] sm:$0xf]
        %v1576 = vld [vmem:[#allocation10 + $0x3c] sm:$0xf]
        %v1577 = vld [vmem:[%s12] sm:$0x1]
        %v1578 = vpack.c.bf16 %v1546, %v1545
        %v1579 = vpack.c.bf16 %v1548, %v1547
        %v1580 = vpack.c.bf16 %v1550, %v1549
        %v1581 = vpack.c.bf16 %v1552, %v1551
        %v1582 = vpack.c.bf16 %v1554, %v1553
        %v1583 = vpack.c.bf16 %v1556, %v1555
        %v1584 = vpack.c.bf16 %v1558, %v1557
        %v1585 = vpack.c.bf16 %v1560, %v1559
        %v1587 = vlaneseq
        %v1588 = vshrl.u32 %v1587, 7
        %v1589 = vsub.s32 0, %v1588
        %v1590 = vrot.slane %v1577, %v1589
        %v1608 = vunpack.c.l.b16 %v1561
        %v1609 = vunpack.c.l.b16 %v1562
        %v1610 = vunpack.c.l.b16 %v1563
        %v1611 = vunpack.c.l.b16 %v1564
        %v1612 = vunpack.c.l.b16 %v1565
        %v1613 = vunpack.c.l.b16 %v1566
        %v1614 = vunpack.c.l.b16 %v1567
        %v1615 = vunpack.c.l.b16 %v1568
        %v1616 = vunpack.c.l.b16 %v1569
        %v1617 = vunpack.c.l.b16 %v1570
        %v1618 = vunpack.c.l.b16 %v1571
        %v1619 = vunpack.c.l.b16 %v1572
        %v1620 = vunpack.c.l.b16 %v1573
        %v1621 = vunpack.c.l.b16 %v1574
        %v1622 = vunpack.c.l.b16 %v1575
        %v1623 = vunpack.c.l.b16 %v1576
        %v1624 = vpack.c.b16 %v1609, %v1608
        %v1625 = vpack.c.b16 %v1611, %v1610
        %v1626 = vpack.c.b16 %v1613, %v1612
        %v1627 = vpack.c.b16 %v1615, %v1614
        %v1628 = vpack.c.b16 %v1617, %v1616
        %v1629 = vpack.c.b16 %v1619, %v1618
        %v1630 = vpack.c.b16 %v1621, %v1620
        %v1631 = vpack.c.b16 %v1623, %v1622
        %1640 = vmatprep.subr.bf16.mxu0 0
        %1641 = vmatpush1.bf16.msra.mxu0 %v1624
        %1642 = vmatprep.subr.bf16.mxu0 0
        %1643 = vmatpush1.bf16.msra.mxu0 %v1625
        %1644 = vmatprep.subr.bf16.mxu0 0
        %1645 = vmatpush1.bf16.msra.mxu0 %v1626
        %1646 = vmatprep.subr.bf16.mxu0 0
        %1647 = vmatpush1.bf16.msra.mxu0 %v1627
        %1648 = vmatprep.subr.bf16.mxu0 0
        %1649 = vmatpush1.bf16.msra.mxu0 %v1628
        %1650 = vmatprep.subr.bf16.mxu0 0
        %1651 = vmatpush1.bf16.msra.mxu0 %v1629
        %1652 = vmatprep.subr.bf16.mxu0 0
        %1653 = vmatpush1.bf16.msra.mxu0 %v1630
        %1654 = vmatprep.subr.bf16.mxu0 0
        %1655 = vmatpush1.bf16.msra.mxu0 %v1631
        %1656 = vmatprep.subr.bf16.mxu0 0
        %1657 = vmatpush1.bf16.msra.mxu0 0
        %1658 = vmatprep.subr.bf16.mxu0 0
        %1659 = vmatpush1.bf16.msra.mxu0 0
        %1660 = vmatprep.subr.bf16.mxu0 0
        %1661 = vmatpush1.bf16.msra.mxu0 0
        %1662 = vmatprep.subr.bf16.mxu0 0
        %1663 = vmatpush1.bf16.msra.mxu0 0
        %1664 = vmatprep.subr.bf16.mxu0 0
        %1665 = vmatpush1.bf16.msra.mxu0 0
        %1666 = vmatprep.subr.bf16.mxu0 0
        %1667 = vmatpush1.bf16.msra.mxu0 0
        %1668 = vmatprep.subr.bf16.mxu0 0
        %1669 = vmatpush1.bf16.msra.mxu0 0
        %1670 = vmatprep.subr.bf16.mxu0 0
        %1671 = vmatpush1.bf16.msra.mxu0 0
        %1672 = vmatprep.mubr.bf16.mxu0 0
        %1673 = vmatmul.mubr.bf16.gmra.mrb[0].mxu0 %v1578
        %v1674 = vpop.f32.mrb[0].mxu0
        %v1675 = vadd.f32 %v1590, %v1674
        %v1676 = vpop.f32.mrb[0].mxu0
        %v1677 = vpop.f32.mrb[0].mxu0
        %v1678 = vadd.f32 %v1590, %v1677
        %v1679 = vpop.f32.mrb[0].mxu0
        %1680 = vmatprep.mubr.bf16.mxu0 0
        %1681 = vmatmul.mubr.bf16.gmra.mrb[0].mxu0 %v1579
        %v1682 = vpop.f32.mrb[0].mxu0
        %v1683 = vadd.f32 %v1590, %v1682
        %v1684 = vpop.f32.mrb[0].mxu0
        %v1685 = vpop.f32.mrb[0].mxu0
        %v1686 = vadd.f32 %v1590, %v1685
        %v1687 = vpop.f32.mrb[0].mxu0
        %1688 = vmatprep.mubr.bf16.mxu0 0
        %1689 = vmatmul.mubr.bf16.gmra.mrb[0].mxu0 %v1580
        %v1690 = vpop.f32.mrb[0].mxu0
        %v1691 = vadd.f32 %v1590, %v1690
        %v1692 = vpop.f32.mrb[0].mxu0
        %v1693 = vpop.f32.mrb[0].mxu0
        %v1694 = vadd.f32 %v1590, %v1693
        %v1695 = vpop.f32.mrb[0].mxu0
        %1696 = vmatprep.mubr.bf16.mxu0 0
        %1697 = vmatmul.mubr.bf16.gmra.mrb[0].mxu0 %v1581
        %v1698 = vpop.f32.mrb[0].mxu0
        %v1699 = vadd.f32 %v1590, %v1698
        %v1700 = vpop.f32.mrb[0].mxu0
        %v1701 = vpop.f32.mrb[0].mxu0
        %v1702 = vadd.f32 %v1590, %v1701
        %v1703 = vpop.f32.mrb[0].mxu0
        %1704 = vmatprep.mubr.bf16.mxu0 0
        %1705 = vmatmul.mubr.bf16.gmra.mrb[0].mxu0 %v1582
        %v1706 = vpop.f32.mrb[0].mxu0
        %v1707 = vadd.f32 %v1590, %v1706
        %v1708 = vpop.f32.mrb[0].mxu0
        %v1709 = vpop.f32.mrb[0].mxu0
        %v1710 = vadd.f32 %v1590, %v1709
        %v1711 = vpop.f32.mrb[0].mxu0
        %1712 = vmatprep.mubr.bf16.mxu0 0
        %1713 = vmatmul.mubr.bf16.gmra.mrb[0].mxu0 %v1583
        %v1714 = vpop.f32.mrb[0].mxu0
        %v1715 = vadd.f32 %v1590, %v1714
        %v1716 = vpop.f32.mrb[0].mxu0
        %v1717 = vpop.f32.mrb[0].mxu0
        %v1718 = vadd.f32 %v1590, %v1717
        %v1719 = vpop.f32.mrb[0].mxu0
        %1720 = vmatprep.mubr.bf16.mxu0 0
        %1721 = vmatmul.mubr.bf16.gmra.mrb[0].mxu0 %v1584
        %v1722 = vpop.f32.mrb[0].mxu0
        %v1723 = vadd.f32 %v1590, %v1722
        %v1724 = vpop.f32.mrb[0].mxu0
        %v1725 = vpop.f32.mrb[0].mxu0
        %v1726 = vadd.f32 %v1590, %v1725
        %v1727 = vpop.f32.mrb[0].mxu0
        %1728 = vmatprep.mubr.bf16.mxu0 0
        %1729 = vmatmul.mubr.bf16.gmra.mrb[0].mxu0 %v1585
        %v1730 = vpop.f32.mrb[0].mxu0
        %v1731 = vadd.f32 %v1590, %v1730
        %v1732 = vpop.f32.mrb[0].mxu0
        %v1733 = vpop.f32.mrb[0].mxu0
        %v1734 = vadd.f32 %v1590, %v1733
        %v1735 = vpop.f32.mrb[0].mxu0
        %1736 = vdwg.mxu0
        %v1737 = vsub.f32 0.0, %v1675
        %v1738 = vsub.f32 0.0, %v1678
        %v1739 = vsub.f32 0.0, %v1683
        %v1740 = vsub.f32 0.0, %v1686
        %v1741 = vsub.f32 0.0, %v1691
        %v1742 = vsub.f32 0.0, %v1694
        %v1743 = vsub.f32 0.0, %v1699
        %v1744 = vsub.f32 0.0, %v1702
        %v1745 = vsub.f32 0.0, %v1707
        %v1746 = vsub.f32 0.0, %v1710
        %v1747 = vsub.f32 0.0, %v1715
        %v1748 = vsub.f32 0.0, %v1718
        %v1749 = vsub.f32 0.0, %v1723
        %v1750 = vsub.f32 0.0, %v1726
        %v1751 = vsub.f32 0.0, %v1731
        %v1752 = vsub.f32 0.0, %v1734
        %v1753 = vmul.f32 %v1737, 1.442695
        %v1754 = vpow.pop %v1753
        %v1755 = vmul.f32 %v1738, 1.442695
        %v1756 = vpow.pop %v1755
        %v1757 = vmul.f32 %v1739, 1.442695
        %v1758 = vpow.pop %v1757
        %v1759 = vmul.f32 %v1740, 1.442695
        %v1760 = vpow.pop %v1759
        %v1761 = vmul.f32 %v1741, 1.442695
        %v1762 = vpow.pop %v1761
        %v1763 = vmul.f32 %v1742, 1.442695
        %v1764 = vpow.pop %v1763
        %v1765 = vmul.f32 %v1743, 1.442695
        %v1766 = vpow.pop %v1765
        %v1767 = vmul.f32 %v1744, 1.442695
        %v1768 = vpow.pop %v1767
        %v1769 = vmul.f32 %v1745, 1.442695
        %v1770 = vpow.pop %v1769
        %v1771 = vmul.f32 %v1746, 1.442695
        %v1772 = vpow.pop %v1771
        %v1773 = vmul.f32 %v1747, 1.442695
        %v1774 = vpow.pop %v1773
        %v1775 = vmul.f32 %v1748, 1.442695
        %v1776 = vpow.pop %v1775
        %v1777 = vmul.f32 %v1749, 1.442695
        %v1778 = vpow.pop %v1777
        %v1779 = vmul.f32 %v1750, 1.442695
        %v1780 = vpow.pop %v1779
        %v1781 = vmul.f32 %v1751, 1.442695
        %v1782 = vpow.pop %v1781
        %v1783 = vmul.f32 %v1752, 1.442695
        %v1784 = vpow.pop %v1783
        %v1785 = vadd.f32 %v1754, 1.0
        %v1786 = vadd.f32 %v1756, 1.0
        %v1787 = vadd.f32 %v1758, 1.0
        %v1788 = vadd.f32 %v1760, 1.0
        %v1789 = vadd.f32 %v1762, 1.0
        %v1790 = vadd.f32 %v1764, 1.0
        %v1791 = vadd.f32 %v1766, 1.0
        %v1792 = vadd.f32 %v1768, 1.0
        %v1793 = vadd.f32 %v1770, 1.0
        %v1794 = vadd.f32 %v1772, 1.0
        %v1795 = vadd.f32 %v1774, 1.0
        %v1796 = vadd.f32 %v1776, 1.0
        %v1797 = vadd.f32 %v1778, 1.0
        %v1798 = vadd.f32 %v1780, 1.0
        %v1799 = vadd.f32 %v1782, 1.0
        %v1800 = vadd.f32 %v1784, 1.0
        %v1801 = vrcp.pop %v1785
        %v1802 = vrcp.pop %v1786
        %v1803 = vrcp.pop %v1787
        %v1804 = vrcp.pop %v1788
        %v1805 = vrcp.pop %v1789
        %v1806 = vrcp.pop %v1790
        %v1807 = vrcp.pop %v1791
        %v1808 = vrcp.pop %v1792
        %v1809 = vrcp.pop %v1793
        %v1810 = vrcp.pop %v1794
        %v1811 = vrcp.pop %v1795
        %v1812 = vrcp.pop %v1796
        %v1813 = vrcp.pop %v1797
        %v1814 = vrcp.pop %v1798
        %v1815 = vrcp.pop %v1799
        %v1816 = vrcp.pop %v1800
        %v1817 = vpack.c.bf16 %v1802, %v1801
        %v1818 = vpack.c.bf16 %v1804, %v1803
        %v1819 = vpack.c.bf16 %v1806, %v1805
        %v1820 = vpack.c.bf16 %v1808, %v1807
        %v1821 = vpack.c.bf16 %v1810, %v1809
        %v1822 = vpack.c.bf16 %v1812, %v1811
        %v1823 = vpack.c.bf16 %v1814, %v1813
        %v1824 = vpack.c.bf16 %v1816, %v1815
        %v1833 = vunpack.c.l.b16 %v1817
        %v1834 = vunpack.c.h.b16 %v1817
        %v1835 = vunpack.c.l.b16 %v1818
        %v1836 = vunpack.c.h.b16 %v1818
        %v1837 = vunpack.c.l.b16 %v1819
        %v1838 = vunpack.c.h.b16 %v1819
        %v1839 = vunpack.c.l.b16 %v1820
        %v1840 = vunpack.c.h.b16 %v1820
        %v1841 = vunpack.c.l.b16 %v1821
        %v1842 = vunpack.c.h.b16 %v1821
        %v1843 = vunpack.c.l.b16 %v1822
        %v1844 = vunpack.c.h.b16 %v1822
        %v1845 = vunpack.c.l.b16 %v1823
        %v1846 = vunpack.c.h.b16 %v1823
        %v1847 = vunpack.c.l.b16 %v1824
        %v1848 = vunpack.c.h.b16 %v1824
        %v1849 = vpack.c.b16 %v1833, %v1833
        %v1850 = vpack.c.b16 %v1834, %v1834
        %v1851 = vpack.c.b16 %v1835, %v1835
        %v1852 = vpack.c.b16 %v1836, %v1836
        %v1853 = vpack.c.b16 %v1837, %v1837
        %v1854 = vpack.c.b16 %v1838, %v1838
        %v1855 = vpack.c.b16 %v1839, %v1839
        %v1856 = vpack.c.b16 %v1840, %v1840
        %v1857 = vpack.c.b16 %v1841, %v1841
        %v1858 = vpack.c.b16 %v1842, %v1842
        %v1859 = vpack.c.b16 %v1843, %v1843
        %v1860 = vpack.c.b16 %v1844, %v1844
        %v1861 = vpack.c.b16 %v1845, %v1845
        %v1862 = vpack.c.b16 %v1846, %v1846
        %v1863 = vpack.c.b16 %v1847, %v1847
        %v1864 = vpack.c.b16 %v1848, %v1848
        %1881 = vst [vmem:[%s503] sm:$0xf] %v1849
        %1882 = vst [vmem:[%s503 + $0x4] sm:$0xf] %v1850
        %1883 = vst [vmem:[%s503 + $0x8] sm:$0xf] %v1851
        %1884 = vst [vmem:[%s503 + $0xc] sm:$0xf] %v1852
        %1885 = vst [vmem:[%s503 + $0x10] sm:$0xf] %v1853
        %1886 = vst [vmem:[%s503 + $0x14] sm:$0xf] %v1854
        %1887 = vst [vmem:[%s503 + $0x18] sm:$0xf] %v1855
        %1888 = vst [vmem:[%s503 + $0x1c] sm:$0xf] %v1856
        %1889 = vst [vmem:[%s503 + $0x20] sm:$0xf] %v1857
        %1890 = vst [vmem:[%s503 + $0x24] sm:$0xf] %v1858
        %1891 = vst [vmem:[%s503 + $0x28] sm:$0xf] %v1859
        %1892 = vst [vmem:[%s503 + $0x2c] sm:$0xf] %v1860
        %1893 = vst [vmem:[%s503 + $0x30] sm:$0xf] %v1861
        %1894 = vst [vmem:[%s503 + $0x34] sm:$0xf] %v1862
        %1895 = vst [vmem:[%s503 + $0x38] sm:$0xf] %v1863
        %1896 = vst [vmem:[%s503 + $0x3c] sm:$0xf] %v1864
        %s1897 = sand.u32 %s316, 1
        %s1898 = scalar_lea.sflag [#allocation4], %s1897
        %s1899 = sand.u32 %s316, 1
        %s1900 = smul.addr %s1899, 64
        %s1901 = scalar_lea.vmem [#allocation11], %s1900
        // Predicated region
        $region93: #{tpu_custom_call.1} parent=71 // pred_check
          %p1902 = pneg %p326
        $region94: #{tpu_custom_call.1} parent=71 // pred_check_branch
          %1904 = sbr.rel (%p1902) target = $region96
        $region95: #{tpu_custom_call.1} parent=71 // pred_region
          %s1905 = smul.u32 16, %s30
          %s1907 = ssub.s32 1024, 1024
          %1908 = vsyncadd %s1898, %s1907
          %s1909 = smul.addr %s1905, 64
          %s1910 = scalar_lea.hbm %s13, %s1909
          %s1911 = sshll.u32 %s1901, 4
          %s1912 = int_to_ptr.vmem [resolvable:$true] %s1911
          %1917 = dma.vmem_to_hbm [thread:$0]  %s1912, 1024, %s1910, %s1898, 64, 64, 4
        $region96: #{tpu_custom_call.1} parent=71 // pred_fallthru
          _
      $region72: #{tpu_custom_call.1} parent=5 // pred_fallthru
        _
      %p1918 = scmp.le.s32.totalorder 2, %s25
      // Predicated region
      $region97: #{tpu_custom_call.1} parent=5 // pred_check
        %p1919 = pneg %p1918
      $region98: #{tpu_custom_call.1} parent=5 // pred_check_branch
        %1921 = sbr.rel (%p1919) target = $region100
      $region99: #{tpu_custom_call.1} parent=5 // pred_region
        %s1922 = ssub.s32 %s25, 2
        // Predicated region
        $region101: #{tpu_custom_call.1} parent=99 // pred_check
          %p1923 = pneg %p332
        $region102: #{tpu_custom_call.1} parent=99 // pred_check_branch
          %1925 = sbr.rel (%p1923) target = $region104
        $region103: #{tpu_custom_call.1} parent=99 // pred_region
          %s1926 = sand.u32 %s317, 1
          %s1927 = scalar_lea.sflag [#allocation4], %s1926
          %s1928 = sand.u32 %s317, 1
          %s1929 = smul.addr %s1928, 64
          %s1930 = scalar_lea.vmem [#allocation11], %s1929
          %1931 = dma.done %s1927, 1024
        $region104: #{tpu_custom_call.1} parent=99 // pred_fallthru
          _
      $region100: #{tpu_custom_call.1} parent=5 // pred_fallthru
        _
    $region6: #{tpu_custom_call.1} parent=1 // loop_footer
      %s29 = sadd.s32 1, %s25
    $region7: #{tpu_custom_call.1} parent=1 // loop_footer_branch
      %24 = sbr.rel target = $region3
    $region8: #{tpu_custom_call.1} parent=1 // loop_exit
      _
    %1932 = vsyncpa [#allocation3], 1
    %s1933 = scalar_lea.sflag [#allocation3], 1
    %1934 = vsyncpa %s1933, 1
    %1935 = vsyncpa [#allocation6], 1
    %1936 = vsyncpa [#allocation9], 1
    %1937 = vsyncpa [#allocation4], 1
    %s1938 = scalar_lea.sflag [#allocation4], 1
    %1939 = vsyncpa %s1938, 1

</llo_original>
